<compile_context>
chip_gen: v7x
topology: tpu7x:2x2x1
jax: 0.10.0
libtpu: 0.0.40
codegen_flags: <defaults>
</compile_context>

<pallas_src>
import jax
import jax.numpy as jnp
from jax.experimental import pallas as pl
from jax.experimental.pallas import tpu as pltpu

N_CLS = 6          # real number of output logits
N_PAD = 128        # FC output padded to one full lane width for unmasked stores


# ---------------- Fused Pallas kernel: conv-as-GEMM + ReLU + FC -----------------

def _fused_forward_kernel(x_ref, wc_ref, bc_ref, wf_ref, bf_ref, o_ref):
    # Conv folded to a dense GEMM; bf16 MXU inputs, f32 accumulate.
    h = jnp.dot(x_ref[...], wc_ref[...], preferred_element_type=jnp.float32)
    h = jnp.maximum(h + bc_ref[...], 0.0)            # bias + ReLU in f32 (VPU)
    h = h.astype(jnp.bfloat16)                       # bf16 MXU path for the 2nd GEMM
    # Final affine layer (no ReLU on the last layer); lane-dense (tm, 128) f32 store.
    o_ref[...] = (jnp.dot(h, wf_ref[...], preferred_element_type=jnp.float32)
                  + bf_ref[...])


def _round_up(x, m):
    return ((x + m - 1) // m) * m


def _pick_tm(B):
    if B < 16:
        return B                               # tiny batch: single step, full-dim block
    # >=2 grid steps once there is enough work (engages both TensorCores on v7x);
    # cap the batch tile at 512 rows — with bf16 weights this stays ~6 MiB / step.
    return min(512, _round_up(pl.cdiv(B, 2), 16))


def flex_cnn_forward(x, prepped):
    """x: (B, 6, 8, 8) f32 NCHW -> (B, 6) f32. Matches flexCNN(conv_layers=1, aff_layers=1)."""
    w_big, b_big, w_fc_t, b_fc2 = prepped
    B = x.shape[0]
    K1 = w_big.shape[0]          # C_in*H*W    = 384
    Kh = w_big.shape[1]          # C_out*OH*OW = 1152

    # Contiguous NCHW flatten (free reshape, no transpose) + bf16 cast (halves x DMA).
    x_flat = x.reshape(B, K1).astype(jnp.bfloat16)

    tm = _pick_tm(B)
    grid = (pl.cdiv(B, tm),)

    flops = 2 * B * (K1 * Kh + Kh * N_PAD)
    bytes_accessed = (B * K1 * 2                  # x (bf16)
                      + w_big.size * 2            # densified conv weight (bf16)
                      + b_big.size * 4
                      + w_fc_t.size * 2           # padded fc weight (bf16)
                      + b_fc2.size * 4
                      + B * N_PAD * 4)            # padded output (f32)

    out_padded = pl.pallas_call(
        _fused_forward_kernel,
        out_shape=jax.ShapeDtypeStruct((B, N_PAD), jnp.float32),
        grid=grid,
        in_specs=[
            pl.BlockSpec((tm, K1), lambda i: (i, 0)),    # x tile (bf16)
            pl.BlockSpec((K1, Kh), lambda i: (0, 0)),    # densified conv weight (resident)
            pl.BlockSpec((1, Kh), lambda i: (0, 0)),     # conv bias (broadcast over positions)
            pl.BlockSpec((Kh, N_PAD), lambda i: (0, 0)), # padded fc weight (resident)
            pl.BlockSpec((1, N_PAD), lambda i: (0, 0)),  # padded fc bias
        ],
        out_specs=pl.BlockSpec((tm, N_PAD), lambda i: (i, 0)),
        compiler_params=pltpu.CompilerParams(
            dimension_semantics=("parallel",),
            vmem_limit_bytes=32 * 1024 * 1024),
        cost_estimate=pl.CostEstimate(flops=flops, transcendentals=0,
                                      bytes_accessed=bytes_accessed),
    )(x_flat, w_big, b_big, w_fc_t, b_fc2)

    # Drop the zero-padded logit columns outside the kernel (cheap XLA slice).
    return out_padded[:, :N_CLS]


# ---------------- One-time weight preparation (outside the jitted forward) ------

def prepare_params(params, H=8, W=8):
    """Fold the VALID conv into a dense GEMM weight, pad+transpose the FC weight.

    Returns (w_big (384,1152) bf16, b_big (1,1152) f32, w_fc_t (1152,128) bf16,
    b_fc (1,128) f32).  Row order of w_big matches x.reshape(B, C*H*W) (NCHW);
    column order matches PyTorch's x.view(B, -1) of the NCHW conv output, so the FC
    weight needs no column permutation.  FC output is zero-padded from 6 to 128 lanes.
    """
    w_conv, b_conv, w_fc, b_fc = params
    C_out, C_in, KH, KW = w_conv.shape
    OH, OW = H - KH + 1, W - KW + 1
    f32 = jnp.float32

    # One-hot shift matrices: sh[k, ih, oh] = 1 iff ih == oh + k (same for width).
    sh = (jnp.arange(H)[None, :, None]
          == (jnp.arange(OH)[None, None, :] + jnp.arange(KH)[:, None, None])).astype(f32)
    sw = (jnp.arange(W)[None, :, None]
          == (jnp.arange(OW)[None, None, :] + jnp.arange(KW)[:, None, None])).astype(f32)

    # T[ci, ih, iw, co, oh, ow] = w_conv[co, ci, ih-oh, iw-ow] (when inside the window)
    w_big = jnp.einsum('oikl,khp,lwq->ihwopq', w_conv.astype(f32), sh, sw)
    w_big = w_big.reshape(C_in * H * W, C_out * OH * OW).astype(jnp.bfloat16)

    b_big = jnp.repeat(b_conv.astype(f32), OH * OW).reshape(1, C_out * OH * OW)

    n_cls, flat = w_fc.shape
    w_fc_t = jnp.zeros((flat, N_PAD), f32).at[:, :n_cls].set(w_fc.astype(f32).T)
    w_fc_t = w_fc_t.astype(jnp.bfloat16)
    b_fc2 = jnp.zeros((1, N_PAD), f32).at[0, :n_cls].set(b_fc.astype(f32))
    return (w_big, b_big, w_fc_t, b_fc2)


# ---------------- Deterministic parameter init (PyTorch-shaped params) ----------

def init_params(key):
    c_in, c_out, k = 6, 32, 3
    board = 8 - (k - 1)                 # 6
    flat = c_out * board * board        # 1152
    n_cls = 6
    k1, k2, k3, k4 = jax.random.split(key, 4)
    # Simple deterministic scaled-normal init (synthetic weights, not a checkpoint).
    w_conv = 0.1 * jax.random.normal(k1, (c_out, c_in, k, k), dtype=jnp.float32)
    b_conv = 0.1 * jax.random.normal(k2, (c_out,), dtype=jnp.float32)
    w_fc = 0.05 * jax.random.normal(k3, (n_cls, flat), dtype=jnp.float32)
    b_fc = 0.05 * jax.random.normal(k4, (n_cls,), dtype=jnp.float32)
    return (w_conv, b_conv, w_fc, b_fc)


if __name__ == "__main__":
    key = jax.random.PRNGKey(0)
    k_params, k_x = jax.random.split(key)
    params = init_params(k_params)          # PyTorch-layout weights
    prepped = prepare_params(params)        # one-time kernel-friendly layout
    x = jax.random.normal(k_x, (2, 6, 8, 8), dtype=jnp.float32)   # (B, C, H, W)

    fwd = jax.jit(flex_cnn_forward)
    out = jax.block_until_ready(fwd(x, prepped))
    assert out.shape == (2, 6) and out.dtype == jnp.float32

    # Sanity check against a pure-JAX f32 reference on the ORIGINAL (PyTorch-layout)
    # weights.  Tolerance loosened for the bf16 weight/activation path (f32 accumulate).
    ref = jax.lax.conv_general_dilated(
        x, params[0], window_strides=(1, 1), padding="VALID",
        dimension_numbers=("NCHW", "OIHW", "NCHW"))
    ref = jnp.maximum(ref + params[1][None, :, None, None], 0.0)
    ref = ref.reshape(2, -1) @ params[2].T + params[3]
    assert jnp.allclose(out, ref, atol=3e-2, rtol=3e-2), float(jnp.max(jnp.abs(out - ref)))

    print("KERNEL_OK")
</pallas_src>

<mosaic_0001>
module attributes {stable_mosaic.version = 11 : i64} {
  func.func @_fused_forward_kernel(%arg0: i32, %arg1: memref<2x384xbf16, #tpu.memory_space<vmem>>, %arg2: memref<384x1152xbf16, #tpu.memory_space<vmem>>, %arg3: memref<1x1152xf32, #tpu.memory_space<vmem>>, %arg4: memref<1152x128xbf16, #tpu.memory_space<vmem>>, %arg5: memref<1x128xf32, #tpu.memory_space<vmem>>, %arg6: memref<2x128xf32, #tpu.memory_space<vmem>>) attributes {dimension_semantics = [#tpu.dimension_semantics<parallel>], iteration_bounds = array<i64: 1>, scalar_prefetch = 0 : i64, scratch_operands = 0 : i64, tpu.core_type = #tpu.core_type<tc>, window_params = [{transform_indices = @transform_0, window_bounds = array<i64: 2, 384>}, {pipeline_mode = #tpu.pipeline_mode<synchronous>, transform_indices = @transform_1, window_bounds = array<i64: 384, 1152>}, {pipeline_mode = #tpu.pipeline_mode<synchronous>, transform_indices = @transform_2, window_bounds = array<i64: 1, 1152>}, {pipeline_mode = #tpu.pipeline_mode<synchronous>, transform_indices = @transform_3, window_bounds = array<i64: 1152, 128>}, {pipeline_mode = #tpu.pipeline_mode<synchronous>, transform_indices = @transform_4, window_bounds = array<i64: 1, 128>}, {transform_indices = @transform_5, window_bounds = array<i64: 2, 128>}]} {
    %c0 = arith.constant 0 : index
    %c0_0 = arith.constant 0 : index
    %0 = vector.load %arg1[%c0, %c0_0] : memref<2x384xbf16, #tpu.memory_space<vmem>>, vector<2x384xbf16>
    %c0_1 = arith.constant 0 : index
    %c0_2 = arith.constant 0 : index
    %1 = vector.load %arg2[%c0_1, %c0_2] : memref<384x1152xbf16, #tpu.memory_space<vmem>>, vector<384x1152xbf16>
    %cst = arith.constant dense<0.000000e+00> : vector<2x1152xf32>
    %2 = tpu.matmul %0, %1, %cst {dimension_numbers = #tpu.dot_dimension_numbers<[1], [0], [0], [1], [0, 0, 1, 1], [], []>} : vector<2x384xbf16>, vector<384x1152xbf16>, vector<2x1152xf32> -> vector<2x1152xf32>
    %c0_3 = arith.constant 0 : index
    %c0_4 = arith.constant 0 : index
    %3 = vector.load %arg3[%c0_3, %c0_4] : memref<1x1152xf32, #tpu.memory_space<vmem>>, vector<1x1152xf32>
    %4 = vector.broadcast %3 : vector<1x1152xf32> to vector<2x1152xf32>
    %5 = arith.addf %2, %4 : vector<2x1152xf32>
    %cst_5 = arith.constant 0.000000e+00 : f32
    %6 = vector.broadcast %cst_5 : f32 to vector<2x1152xf32>
    %7 = arith.maximumf %5, %6 : vector<2x1152xf32>
    %8 = arith.truncf %7 : vector<2x1152xf32> to vector<2x1152xbf16>
    %c0_6 = arith.constant 0 : index
    %c0_7 = arith.constant 0 : index
    %9 = vector.load %arg4[%c0_6, %c0_7] : memref<1152x128xbf16, #tpu.memory_space<vmem>>, vector<1152x128xbf16>
    %cst_8 = arith.constant dense<0.000000e+00> : vector<2x128xf32>
    %10 = tpu.matmul %8, %9, %cst_8 {dimension_numbers = #tpu.dot_dimension_numbers<[1], [0], [0], [1], [0, 0, 1, 1], [], []>} : vector<2x1152xbf16>, vector<1152x128xbf16>, vector<2x128xf32> -> vector<2x128xf32>
    %c0_9 = arith.constant 0 : index
    %c0_10 = arith.constant 0 : index
    %11 = vector.load %arg5[%c0_9, %c0_10] : memref<1x128xf32, #tpu.memory_space<vmem>>, vector<1x128xf32>
    %12 = vector.broadcast %11 : vector<1x128xf32> to vector<2x128xf32>
    %13 = arith.addf %10, %12 : vector<2x128xf32>
    %c0_11 = arith.constant 0 : index
    %c0_12 = arith.constant 0 : index
    %14 = vector.load %arg6[%c0_11, %c0_12] : memref<2x128xf32, #tpu.memory_space<vmem>>, vector<2x128xf32>
    tpu.vector_store %arg6[%c0_11, %c0_12], %13 {strides = array<i32>} : memref<2x128xf32, #tpu.memory_space<vmem>>, vector<2x128xf32>,
    return
  }
  func.func @transform_0(%arg0: i32) -> (i32, i32) {
    %c0_i32 = arith.constant 0 : i32
    %c0_i32_0 = arith.constant 0 : i32
    return %arg0, %c0_i32 : i32, i32
  }
  func.func @transform_1(%arg0: i32) -> (i32, i32) {
    %c0_i32 = arith.constant 0 : i32
    %c0_i32_0 = arith.constant 0 : i32
    %c0_i32_1 = arith.constant 0 : i32
    return %c0_i32, %c0_i32_0 : i32, i32
  }
  func.func @transform_2(%arg0: i32) -> (i32, i32) {
    %c0_i32 = arith.constant 0 : i32
    %c0_i32_0 = arith.constant 0 : i32
    %c0_i32_1 = arith.constant 0 : i32
    return %c0_i32, %c0_i32_0 : i32, i32
  }
  func.func @transform_3(%arg0: i32) -> (i32, i32) {
    %c0_i32 = arith.constant 0 : i32
    %c0_i32_0 = arith.constant 0 : i32
    %c0_i32_1 = arith.constant 0 : i32
    return %c0_i32, %c0_i32_0 : i32, i32
  }
  func.func @transform_4(%arg0: i32) -> (i32, i32) {
    %c0_i32 = arith.constant 0 : i32
    %c0_i32_0 = arith.constant 0 : i32
    %c0_i32_1 = arith.constant 0 : i32
    return %c0_i32, %c0_i32_0 : i32, i32
  }
  func.func @transform_5(%arg0: i32) -> (i32, i32) {
    %c0_i32 = arith.constant 0 : i32
    %c0_i32_0 = arith.constant 0 : i32
    return %arg0, %c0_i32 : i32, i32
  }
}

</mosaic_0001>

<llo_original>
// kernel: flex_cnn_forward.1
$region0: #{flex_cnn_forward.1}
  #allocation0 [shape = 'u32[]', space=smem, size = 0x4, offset = 0x4, fixed_abs, tag = 'smem constant byte address 0x4 - core index']
  #allocation1 [shape = 'u32[144,128]{1,0:T(1,128)}', space=vmem, size = 0x12000, scoped, tag = 'internal scratch']
  %s0 = inlined_call_operand.vmem [shape: bf16[2,384], index: 0, kind: input, shape index: {}]
  %s1 = inlined_call_operand.hbm [shape: bf16[384,1152], index: 1, kind: input, shape index: {}]
  %s2 = inlined_call_operand.vmem [shape: f32[1,1152], index: 2, kind: input, shape index: {}]
  %s3 = inlined_call_operand.hbm [shape: bf16[1152,128], index: 3, kind: input, shape index: {}]
  %s4 = inlined_call_operand.vmem [shape: f32[1,128], index: 4, kind: input, shape index: {}]
  %s5 = inlined_call_operand.hbm [shape: f32[2,128], index: 5, kind: output, shape index: {}]
  %s6 = sld [smem:[#allocation0]]
  $region38: #{flex_cnn_forward.1} parent=0
    _
  %s8 = ssub.s32 1, %s6
  %s9 = scalar_select 0, %s8, %s6
  $region1: #{flex_cnn_forward.1} parent=0
    #allocation2 [shape = 'u8[884736]{0}', space=vmem, size = 0xd8000, scoped, tag = 'input window, operand 1, single buffered']
    #allocation3 [shape = 's32[1]{0}', space=sflag, size = 0x4, scoped, tag = 'scoped memory for flex_cnn_forward.1']
    #allocation4 [shape = 's32[1]{0}', space=sflag, size = 0x4, scoped, tag = 'scoped memory for flex_cnn_forward.1']
    #allocation5 [shape = 'u8[294912]{0}', space=vmem, size = 0x48000, scoped, tag = 'input window, operand 3, single buffered']
    #allocation6 [shape = 's32[1]{0}', space=sflag, size = 0x4, scoped, tag = 'scoped memory for flex_cnn_forward.1']
    #allocation7 [shape = 'u8[1024]{0}', space=vmem, size = 0x400, scoped, tag = 'output window, operand 0, single buffered']
    %10 = vsyncpa [#allocation3], 0
    %11 = vsyncpa [#allocation6], 0
    %12 = vsyncpa [#allocation4], 0
    // Predicated region
    $region2: #{flex_cnn_forward.1} parent=1 // pred_check
      _
    $region3: #{flex_cnn_forward.1} parent=1 // pred_check_branch
      %14 = sbr.rel (0) target = $region5
    $region4: #{flex_cnn_forward.1} parent=1 // pred_region
      _
    $region5: #{flex_cnn_forward.1} parent=1 // pred_fallthru
      _
    // Predicated region
    $region6: #{flex_cnn_forward.1} parent=1 // pred_check
      _
    $region7: #{flex_cnn_forward.1} parent=1 // pred_check_branch
      %16 = sbr.rel (0) target = $region9
    $region8: #{flex_cnn_forward.1} parent=1 // pred_region
      %s18 = ssub.s32 27648, 27648
      %19 = vsyncadd [#allocation3], %s18
      %s20 = sshll.u32 [#allocation2], 4
      %s21 = int_to_ptr.vmem [resolvable:$true] %s20
      %26 = dma.hbm_to_vmem [thread:$0]  %s1, 27648, %s21, [#allocation3], 576, 576, 36
    $region9: #{flex_cnn_forward.1} parent=1 // pred_fallthru
      _
    // Predicated region
    $region10: #{flex_cnn_forward.1} parent=1 // pred_check
      _
    $region11: #{flex_cnn_forward.1} parent=1 // pred_check_branch
      %28 = sbr.rel (0) target = $region13
    $region12: #{flex_cnn_forward.1} parent=1 // pred_region
      _
    $region13: #{flex_cnn_forward.1} parent=1 // pred_fallthru
      _
    // Predicated region
    $region14: #{flex_cnn_forward.1} parent=1 // pred_check
      _
    $region15: #{flex_cnn_forward.1} parent=1 // pred_check_branch
      %30 = sbr.rel (0) target = $region17
    $region16: #{flex_cnn_forward.1} parent=1 // pred_region
      %s32 = ssub.s32 9216, 9216
      %33 = vsyncadd [#allocation6], %s32
      %s34 = sshll.u32 [#allocation5], 4
      %s35 = int_to_ptr.vmem [resolvable:$true] %s34
      %40 = dma.hbm_to_vmem [thread:$0]  %s3, 9216, %s35, [#allocation6], 64, 64, 4
    $region17: #{flex_cnn_forward.1} parent=1 // pred_fallthru
      _
    // Predicated region
    $region18: #{flex_cnn_forward.1} parent=1 // pred_check
      _
    $region19: #{flex_cnn_forward.1} parent=1 // pred_check_branch
      %42 = sbr.rel (0) target = $region21
    $region20: #{flex_cnn_forward.1} parent=1 // pred_region
      _
    $region21: #{flex_cnn_forward.1} parent=1 // pred_fallthru
      _
    // Predicated region
    $region22: #{flex_cnn_forward.1} parent=1 // pred_check
      _
    $region23: #{flex_cnn_forward.1} parent=1 // pred_check_branch
      %44 = sbr.rel (0) target = $region25
    $region24: #{flex_cnn_forward.1} parent=1 // pred_region
      %45 = dma.done [#allocation3], 27648
    $region25: #{flex_cnn_forward.1} parent=1 // pred_fallthru
      _
    // Predicated region
    $region26: #{flex_cnn_forward.1} parent=1 // pred_check
      _
    $region27: #{flex_cnn_forward.1} parent=1 // pred_check_branch
      %47 = sbr.rel (0) target = $region29
    $region28: #{flex_cnn_forward.1} parent=1 // pred_region
      %48 = dma.done [#allocation6], 9216
    $region29: #{flex_cnn_forward.1} parent=1 // pred_fallthru
      _
    %v50 = vld [vmem:[%s0] sm:$0x7]
    %v51 = vld [vmem:[#allocation2] sm:$0xff]
    %v52 = vld [vmem:[#allocation2 + $0x8] sm:$0xff]
    %v53 = vld [vmem:[#allocation2 + $0x10] sm:$0xff]
    %v54 = vld [vmem:[#allocation2 + $0x18] sm:$0xff]
    %v55 = vld [vmem:[#allocation2 + $0x20] sm:$0xf]
    %v56 = vld [vmem:[#allocation2 + $0x24] sm:$0xff]
    %v57 = vld [vmem:[#allocation2 + $0x2c] sm:$0xff]
    %v58 = vld [vmem:[#allocation2 + $0x34] sm:$0xff]
    %v59 = vld [vmem:[#allocation2 + $0x3c] sm:$0xff]
    %v60 = vld [vmem:[#allocation2 + $0x44] sm:$0xf]
    %v61 = vld [vmem:[#allocation2 + $0x48] sm:$0xff]
    %v62 = vld [vmem:[#allocation2 + $0x50] sm:$0xff]
    %v63 = vld [vmem:[#allocation2 + $0x58] sm:$0xff]
    %v64 = vld [vmem:[#allocation2 + $0x60] sm:$0xff]
    %v65 = vld [vmem:[#allocation2 + $0x68] sm:$0xf]
    %v66 = vld [vmem:[#allocation2 + $0x6c] sm:$0xff]
    %v67 = vld [vmem:[#allocation2 + $0x74] sm:$0xff]
    %v68 = vld [vmem:[#allocation2 + $0x7c] sm:$0xff]
    %v69 = vld [vmem:[#allocation2 + $0x84] sm:$0xff]
    %v70 = vld [vmem:[#allocation2 + $0x8c] sm:$0xf]
    %v71 = vld [vmem:[#allocation2 + $0x90] sm:$0xff]
    %v72 = vld [vmem:[#allocation2 + $0x98] sm:$0xff]
    %v73 = vld [vmem:[#allocation2 + $0xa0] sm:$0xff]
    %v74 = vld [vmem:[#allocation2 + $0xa8] sm:$0xff]
    %v75 = vld [vmem:[#allocation2 + $0xb0] sm:$0xf]
    %v76 = vld [vmem:[#allocation2 + $0xb4] sm:$0xff]
    %v77 = vld [vmem:[#allocation2 + $0xbc] sm:$0xff]
    %v78 = vld [vmem:[#allocation2 + $0xc4] sm:$0xff]
    %v79 = vld [vmem:[#allocation2 + $0xcc] sm:$0xff]
    %v80 = vld [vmem:[#allocation2 + $0xd4] sm:$0xf]
    %v81 = vld [vmem:[#allocation2 + $0xd8] sm:$0xff]
    %v82 = vld [vmem:[#allocation2 + $0xe0] sm:$0xff]
    %v83 = vld [vmem:[#allocation2 + $0xe8] sm:$0xff]
    %v84 = vld [vmem:[#allocation2 + $0xf0] sm:$0xff]
    %v85 = vld [vmem:[#allocation2 + $0xf8] sm:$0xf]
    %v86 = vld [vmem:[#allocation2 + $0xfc] sm:$0xff]
    %v87 = vld [vmem:[#allocation2 + $0x104] sm:$0xff]
    %v88 = vld [vmem:[#allocation2 + $0x10c] sm:$0xff]
    %v89 = vld [vmem:[#allocation2 + $0x114] sm:$0xff]
    %v90 = vld [vmem:[#allocation2 + $0x11c] sm:$0xf]
    %v91 = vld [vmem:[#allocation2 + $0x120] sm:$0xff]
    %v92 = vld [vmem:[#allocation2 + $0x128] sm:$0xff]
    %v93 = vld [vmem:[#allocation2 + $0x130] sm:$0xff]
    %v94 = vld [vmem:[#allocation2 + $0x138] sm:$0xff]
    %v95 = vld [vmem:[#allocation2 + $0x140] sm:$0xf]
    %v96 = vld [vmem:[#allocation2 + $0x144] sm:$0xff]
    %v97 = vld [vmem:[#allocation2 + $0x14c] sm:$0xff]
    %v98 = vld [vmem:[#allocation2 + $0x154] sm:$0xff]
    %v99 = vld [vmem:[#allocation2 + $0x15c] sm:$0xff]
    %v100 = vld [vmem:[#allocation2 + $0x164] sm:$0xf]
    %v101 = vld [vmem:[#allocation2 + $0x168] sm:$0xff]
    %v102 = vld [vmem:[#allocation2 + $0x170] sm:$0xff]
    %v103 = vld [vmem:[#allocation2 + $0x178] sm:$0xff]
    %v104 = vld [vmem:[#allocation2 + $0x180] sm:$0xff]
    %v105 = vld [vmem:[#allocation2 + $0x188] sm:$0xf]
    %v106 = vld [vmem:[#allocation2 + $0x18c] sm:$0xff]
    %v107 = vld [vmem:[#allocation2 + $0x194] sm:$0xff]
    %v108 = vld [vmem:[#allocation2 + $0x19c] sm:$0xff]
    %v109 = vld [vmem:[#allocation2 + $0x1a4] sm:$0xff]
    %v110 = vld [vmem:[#allocation2 + $0x1ac] sm:$0xf]
    %v111 = vld [vmem:[#allocation2 + $0x1b0] sm:$0xff]
    %v112 = vld [vmem:[#allocation2 + $0x1b8] sm:$0xff]
    %v113 = vld [vmem:[#allocation2 + $0x1c0] sm:$0xff]
    %v114 = vld [vmem:[#allocation2 + $0x1c8] sm:$0xff]
    %v115 = vld [vmem:[#allocation2 + $0x1d0] sm:$0xf]
    %v116 = vld [vmem:[#allocation2 + $0x1d4] sm:$0xff]
    %v117 = vld [vmem:[#allocation2 + $0x1dc] sm:$0xff]
    %v118 = vld [vmem:[#allocation2 + $0x1e4] sm:$0xff]
    %v119 = vld [vmem:[#allocation2 + $0x1ec] sm:$0xff]
    %v120 = vld [vmem:[#allocation2 + $0x1f4] sm:$0xf]
    %v121 = vld [vmem:[#allocation2 + $0x1f8] sm:$0xff]
    %v122 = vld [vmem:[#allocation2 + $0x200] sm:$0xff]
    %v123 = vld [vmem:[#allocation2 + $0x208] sm:$0xff]
    %v124 = vld [vmem:[#allocation2 + $0x210] sm:$0xff]
    %v125 = vld [vmem:[#allocation2 + $0x218] sm:$0xf]
    %v126 = vld [vmem:[#allocation2 + $0x21c] sm:$0xff]
    %v127 = vld [vmem:[#allocation2 + $0x224] sm:$0xff]
    %v128 = vld [vmem:[#allocation2 + $0x22c] sm:$0xff]
    %v129 = vld [vmem:[#allocation2 + $0x234] sm:$0xff]
    %v130 = vld [vmem:[#allocation2 + $0x23c] sm:$0xf]
    %v131 = vld [vmem:[#allocation2 + $0x240] sm:$0xff]
    %v132 = vld [vmem:[#allocation2 + $0x248] sm:$0xff]
    %v133 = vld [vmem:[#allocation2 + $0x250] sm:$0xff]
    %v134 = vld [vmem:[#allocation2 + $0x258] sm:$0xff]
    %v135 = vld [vmem:[#allocation2 + $0x260] sm:$0xf]
    %v136 = vld [vmem:[#allocation2 + $0x264] sm:$0xff]
    %v137 = vld [vmem:[#allocation2 + $0x26c] sm:$0xff]
    %v138 = vld [vmem:[#allocation2 + $0x274] sm:$0xff]
    %v139 = vld [vmem:[#allocation2 + $0x27c] sm:$0xff]
    %v140 = vld [vmem:[#allocation2 + $0x284] sm:$0xf]
    %v141 = vld [vmem:[#allocation2 + $0x288] sm:$0xff]
    %v142 = vld [vmem:[#allocation2 + $0x290] sm:$0xff]
    %v143 = vld [vmem:[#allocation2 + $0x298] sm:$0xff]
    %v144 = vld [vmem:[#allocation2 + $0x2a0] sm:$0xff]
    %v145 = vld [vmem:[#allocation2 + $0x2a8] sm:$0xf]
    %v146 = vld [vmem:[#allocation2 + $0x2ac] sm:$0xff]
    %v147 = vld [vmem:[#allocation2 + $0x2b4] sm:$0xff]
    %v148 = vld [vmem:[#allocation2 + $0x2bc] sm:$0xff]
    %v149 = vld [vmem:[#allocation2 + $0x2c4] sm:$0xff]
    %v150 = vld [vmem:[#allocation2 + $0x2cc] sm:$0xf]
    %v151 = vld [vmem:[#allocation2 + $0x2d0] sm:$0xff]
    %v152 = vld [vmem:[#allocation2 + $0x2d8] sm:$0xff]
    %v153 = vld [vmem:[#allocation2 + $0x2e0] sm:$0xff]
    %v154 = vld [vmem:[#allocation2 + $0x2e8] sm:$0xff]
    %v155 = vld [vmem:[#allocation2 + $0x2f0] sm:$0xf]
    %v156 = vld [vmem:[#allocation2 + $0x2f4] sm:$0xff]
    %v157 = vld [vmem:[#allocation2 + $0x2fc] sm:$0xff]
    %v158 = vld [vmem:[#allocation2 + $0x304] sm:$0xff]
    %v159 = vld [vmem:[#allocation2 + $0x30c] sm:$0xff]
    %v160 = vld [vmem:[#allocation2 + $0x314] sm:$0xf]
    %v161 = vld [vmem:[#allocation2 + $0x318] sm:$0xff]
    %v162 = vld [vmem:[#allocation2 + $0x320] sm:$0xff]
    %v163 = vld [vmem:[#allocation2 + $0x328] sm:$0xff]
    %v164 = vld [vmem:[#allocation2 + $0x330] sm:$0xff]
    %v165 = vld [vmem:[#allocation2 + $0x338] sm:$0xf]
    %v166 = vld [vmem:[#allocation2 + $0x33c] sm:$0xff]
    %v167 = vld [vmem:[#allocation2 + $0x344] sm:$0xff]
    %v168 = vld [vmem:[#allocation2 + $0x34c] sm:$0xff]
    %v169 = vld [vmem:[#allocation2 + $0x354] sm:$0xff]
    %v170 = vld [vmem:[#allocation2 + $0x35c] sm:$0xf]
    %v171 = vld [vmem:[#allocation2 + $0x360] sm:$0xff]
    %v172 = vld [vmem:[#allocation2 + $0x368] sm:$0xff]
    %v173 = vld [vmem:[#allocation2 + $0x370] sm:$0xff]
    %v174 = vld [vmem:[#allocation2 + $0x378] sm:$0xff]
    %v175 = vld [vmem:[#allocation2 + $0x380] sm:$0xf]
    %v176 = vld [vmem:[#allocation2 + $0x384] sm:$0xff]
    %v177 = vld [vmem:[#allocation2 + $0x38c] sm:$0xff]
    %v178 = vld [vmem:[#allocation2 + $0x394] sm:$0xff]
    %v179 = vld [vmem:[#allocation2 + $0x39c] sm:$0xff]
    %v180 = vld [vmem:[#allocation2 + $0x3a4] sm:$0xf]
    %v181 = vld [vmem:[#allocation2 + $0x3a8] sm:$0xff]
    %v182 = vld [vmem:[#allocation2 + $0x3b0] sm:$0xff]
    %v183 = vld [vmem:[#allocation2 + $0x3b8] sm:$0xff]
    %v184 = vld [vmem:[#allocation2 + $0x3c0] sm:$0xff]
    %v185 = vld [vmem:[#allocation2 + $0x3c8] sm:$0xf]
    %v186 = vld [vmem:[#allocation2 + $0x3cc] sm:$0xff]
    %v187 = vld [vmem:[#allocation2 + $0x3d4] sm:$0xff]
    %v188 = vld [vmem:[#allocation2 + $0x3dc] sm:$0xff]
    %v189 = vld [vmem:[#allocation2 + $0x3e4] sm:$0xff]
    %v190 = vld [vmem:[#allocation2 + $0x3ec] sm:$0xf]
    %v191 = vld [vmem:[#allocation2 + $0x3f0] sm:$0xff]
    %v192 = vld [vmem:[#allocation2 + $0x3f8] sm:$0xff]
    %v193 = vld [vmem:[#allocation2 + $0x400] sm:$0xff]
    %v194 = vld [vmem:[#allocation2 + $0x408] sm:$0xff]
    %v195 = vld [vmem:[#allocation2 + $0x410] sm:$0xf]
    %v196 = vld [vmem:[#allocation2 + $0x414] sm:$0xff]
    %v197 = vld [vmem:[#allocation2 + $0x41c] sm:$0xff]
    %v198 = vld [vmem:[#allocation2 + $0x424] sm:$0xff]
    %v199 = vld [vmem:[#allocation2 + $0x42c] sm:$0xff]
    %v200 = vld [vmem:[#allocation2 + $0x434] sm:$0xf]
    %v201 = vld [vmem:[#allocation2 + $0x438] sm:$0xff]
    %v202 = vld [vmem:[#allocation2 + $0x440] sm:$0xff]
    %v203 = vld [vmem:[#allocation2 + $0x448] sm:$0xff]
    %v204 = vld [vmem:[#allocation2 + $0x450] sm:$0xff]
    %v205 = vld [vmem:[#allocation2 + $0x458] sm:$0xf]
    %v206 = vld [vmem:[#allocation2 + $0x45c] sm:$0xff]
    %v207 = vld [vmem:[#allocation2 + $0x464] sm:$0xff]
    %v208 = vld [vmem:[#allocation2 + $0x46c] sm:$0xff]
    %v209 = vld [vmem:[#allocation2 + $0x474] sm:$0xff]
    %v210 = vld [vmem:[#allocation2 + $0x47c] sm:$0xf]
    %v211 = vld [vmem:[#allocation2 + $0x480] sm:$0xff]
    %v212 = vld [vmem:[#allocation2 + $0x488] sm:$0xff]
    %v213 = vld [vmem:[#allocation2 + $0x490] sm:$0xff]
    %v214 = vld [vmem:[#allocation2 + $0x498] sm:$0xff]
    %v215 = vld [vmem:[#allocation2 + $0x4a0] sm:$0xf]
    %v216 = vld [vmem:[#allocation2 + $0x4a4] sm:$0xff]
    %v217 = vld [vmem:[#allocation2 + $0x4ac] sm:$0xff]
    %v218 = vld [vmem:[#allocation2 + $0x4b4] sm:$0xff]
    %v219 = vld [vmem:[#allocation2 + $0x4bc] sm:$0xff]
    %v220 = vld [vmem:[#allocation2 + $0x4c4] sm:$0xf]
    %v221 = vld [vmem:[#allocation2 + $0x4c8] sm:$0xff]
    %v222 = vld [vmem:[#allocation2 + $0x4d0] sm:$0xff]
    %v223 = vld [vmem:[#allocation2 + $0x4d8] sm:$0xff]
    %v224 = vld [vmem:[#allocation2 + $0x4e0] sm:$0xff]
    %v225 = vld [vmem:[#allocation2 + $0x4e8] sm:$0xf]
    %v226 = vld [vmem:[#allocation2 + $0x4ec] sm:$0xff]
    %v227 = vld [vmem:[#allocation2 + $0x4f4] sm:$0xff]
    %v228 = vld [vmem:[#allocation2 + $0x4fc] sm:$0xff]
    %v229 = vld [vmem:[#allocation2 + $0x504] sm:$0xff]
    %v230 = vld [vmem:[#allocation2 + $0x50c] sm:$0xf]
    %v231 = vld [vmem:[#allocation2 + $0x510] sm:$0xff]
    %v232 = vld [vmem:[#allocation2 + $0x518] sm:$0xff]
    %v233 = vld [vmem:[#allocation2 + $0x520] sm:$0xff]
    %v234 = vld [vmem:[#allocation2 + $0x528] sm:$0xff]
    %v235 = vld [vmem:[#allocation2 + $0x530] sm:$0xf]
    %v236 = vld [vmem:[#allocation2 + $0x534] sm:$0xff]
    %v237 = vld [vmem:[#allocation2 + $0x53c] sm:$0xff]
    %v238 = vld [vmem:[#allocation2 + $0x544] sm:$0xff]
    %v239 = vld [vmem:[#allocation2 + $0x54c] sm:$0xff]
    %v240 = vld [vmem:[#allocation2 + $0x554] sm:$0xf]
    %v241 = vld [vmem:[#allocation2 + $0x558] sm:$0xff]
    %v242 = vld [vmem:[#allocation2 + $0x560] sm:$0xff]
    %v243 = vld [vmem:[#allocation2 + $0x568] sm:$0xff]
    %v244 = vld [vmem:[#allocation2 + $0x570] sm:$0xff]
    %v245 = vld [vmem:[#allocation2 + $0x578] sm:$0xf]
    %v246 = vld [vmem:[#allocation2 + $0x57c] sm:$0xff]
    %v247 = vld [vmem:[#allocation2 + $0x584] sm:$0xff]
    %v248 = vld [vmem:[#allocation2 + $0x58c] sm:$0xff]
    %v249 = vld [vmem:[#allocation2 + $0x594] sm:$0xff]
    %v250 = vld [vmem:[#allocation2 + $0x59c] sm:$0xf]
    %v251 = vld [vmem:[#allocation2 + $0x5a0] sm:$0xff]
    %v252 = vld [vmem:[#allocation2 + $0x5a8] sm:$0xff]
    %v253 = vld [vmem:[#allocation2 + $0x5b0] sm:$0xff]
    %v254 = vld [vmem:[#allocation2 + $0x5b8] sm:$0xff]
    %v255 = vld [vmem:[#allocation2 + $0x5c0] sm:$0xf]
    %v256 = vld [vmem:[#allocation2 + $0x5c4] sm:$0xff]
    %v257 = vld [vmem:[#allocation2 + $0x5cc] sm:$0xff]
    %v258 = vld [vmem:[#allocation2 + $0x5d4] sm:$0xff]
    %v259 = vld [vmem:[#allocation2 + $0x5dc] sm:$0xff]
    %v260 = vld [vmem:[#allocation2 + $0x5e4] sm:$0xf]
    %v261 = vld [vmem:[#allocation2 + $0x5e8] sm:$0xff]
    %v262 = vld [vmem:[#allocation2 + $0x5f0] sm:$0xff]
    %v263 = vld [vmem:[#allocation2 + $0x5f8] sm:$0xff]
    %v264 = vld [vmem:[#allocation2 + $0x600] sm:$0xff]
    %v265 = vld [vmem:[#allocation2 + $0x608] sm:$0xf]
    %v266 = vld [vmem:[#allocation2 + $0x60c] sm:$0xff]
    %v267 = vld [vmem:[#allocation2 + $0x614] sm:$0xff]
    %v268 = vld [vmem:[#allocation2 + $0x61c] sm:$0xff]
    %v269 = vld [vmem:[#allocation2 + $0x624] sm:$0xff]
    %v270 = vld [vmem:[#allocation2 + $0x62c] sm:$0xf]
    %v271 = vld [vmem:[#allocation2 + $0x630] sm:$0xff]
    %v272 = vld [vmem:[#allocation2 + $0x638] sm:$0xff]
    %v273 = vld [vmem:[#allocation2 + $0x640] sm:$0xff]
    %v274 = vld [vmem:[#allocation2 + $0x648] sm:$0xff]
    %v275 = vld [vmem:[#allocation2 + $0x650] sm:$0xf]
    %v276 = vld [vmem:[#allocation2 + $0x654] sm:$0xff]
    %v277 = vld [vmem:[#allocation2 + $0x65c] sm:$0xff]
    %v278 = vld [vmem:[#allocation2 + $0x664] sm:$0xff]
    %v279 = vld [vmem:[#allocation2 + $0x66c] sm:$0xff]
    %v280 = vld [vmem:[#allocation2 + $0x674] sm:$0xf]
    %v281 = vld [vmem:[#allocation2 + $0x678] sm:$0xff]
    %v282 = vld [vmem:[#allocation2 + $0x680] sm:$0xff]
    %v283 = vld [vmem:[#allocation2 + $0x688] sm:$0xff]
    %v284 = vld [vmem:[#allocation2 + $0x690] sm:$0xff]
    %v285 = vld [vmem:[#allocation2 + $0x698] sm:$0xf]
    %v286 = vld [vmem:[#allocation2 + $0x69c] sm:$0xff]
    %v287 = vld [vmem:[#allocation2 + $0x6a4] sm:$0xff]
    %v288 = vld [vmem:[#allocation2 + $0x6ac] sm:$0xff]
    %v289 = vld [vmem:[#allocation2 + $0x6b4] sm:$0xff]
    %v290 = vld [vmem:[#allocation2 + $0x6bc] sm:$0xf]
    %v291 = vld [vmem:[%s2] sm:$0xff]
    %v292 = vld [vmem:[%s2 + $0x8] sm:$0x1]
    %v295 = vlaneseq
    %v296 = vshrl.u32 %v295, 7
    %v297 = vsub.s32 0, %v296
    %v298 = vrot.slane %v291, %v297
    %v299 = vlaneseq
    %v300 = vshrl.u32 %v299, 7
    %v301 = vsub.s32 1, %v300
    %v302 = vrot.slane %v291, %v301
    %v303 = vlaneseq
    %v304 = vshrl.u32 %v303, 7
    %v305 = vsub.s32 2, %v304
    %v306 = vrot.slane %v291, %v305
    %v307 = vlaneseq
    %v308 = vshrl.u32 %v307, 7
    %v309 = vsub.s32 3, %v308
    %v310 = vrot.slane %v291, %v309
    %v311 = vlaneseq
    %v312 = vshrl.u32 %v311, 7
    %v313 = vsub.s32 4, %v312
    %v314 = vrot.slane %v291, %v313
    %v315 = vlaneseq
    %v316 = vshrl.u32 %v315, 7
    %v317 = vsub.s32 5, %v316
    %v318 = vrot.slane %v291, %v317
    %v319 = vlaneseq
    %v320 = vshrl.u32 %v319, 7
    %v321 = vsub.s32 6, %v320
    %v322 = vrot.slane %v291, %v321
    %v323 = vlaneseq
    %v324 = vshrl.u32 %v323, 7
    %v325 = vsub.s32 7, %v324
    %v326 = vrot.slane %v291, %v325
    %v327 = vlaneseq
    %v328 = vshrl.u32 %v327, 7
    %v329 = vsub.s32 0, %v328
    %v330 = vrot.slane %v292, %v329
    %v342 = vunpack.c.l.s4 1966171168
    %v343 = vunpack.c.0.s8 %v342
    %v344 = vlaneseq
    %v345 = vshrl.u32 %v344, 7
    %v346 = vsub.s32 %v343, %v345
    %v347 = vrot.slane %v50, %v346
    %v348 = vcombine.high %v347, %v347
    %v350 = vunpack.c.l.s4 1966171168
    %v351 = vunpack.c.0.s8 %v350
    %v352 = vlaneseq
    %v353 = vshrl.u32 %v352, 7
    %v354 = vsub.s32 %v351, %v353
    %v355 = vrot.slane %v347, %v354
    %v357 = vunpack.c.l.s4 1966171168
    %v358 = vunpack.c.0.s8 %v357
    %v359 = vlaneseq
    %v360 = vshrl.u32 %v359, 7
    %v361 = vsub.s32 %v358, %v360
    %v362 = vrot.slane %v348, %v361
    %v363 = vcombine.high %v355, %v355
    %v607 = vunpack.c.l.b16 %v51
    %v608 = vunpack.c.h.b16 %v51
    %v609 = vunpack.c.l.b16 %v52
    %v610 = vunpack.c.h.b16 %v52
    %v611 = vunpack.c.l.b16 %v53
    %v612 = vunpack.c.h.b16 %v53
    %v613 = vunpack.c.l.b16 %v54
    %v614 = vunpack.c.h.b16 %v54
    %v615 = vunpack.c.l.b16 %v55
    %v616 = vunpack.c.l.b16 %v56
    %v617 = vunpack.c.h.b16 %v56
    %v618 = vunpack.c.l.b16 %v57
    %v619 = vunpack.c.h.b16 %v57
    %v620 = vunpack.c.l.b16 %v58
    %v621 = vunpack.c.h.b16 %v58
    %v622 = vunpack.c.l.b16 %v59
    %v623 = vunpack.c.h.b16 %v59
    %v624 = vunpack.c.l.b16 %v60
    %v625 = vunpack.c.l.b16 %v61
    %v626 = vunpack.c.h.b16 %v61
    %v627 = vunpack.c.l.b16 %v62
    %v628 = vunpack.c.h.b16 %v62
    %v629 = vunpack.c.l.b16 %v63
    %v630 = vunpack.c.h.b16 %v63
    %v631 = vunpack.c.l.b16 %v64
    %v632 = vunpack.c.h.b16 %v64
    %v633 = vunpack.c.l.b16 %v65
    %v634 = vunpack.c.l.b16 %v66
    %v635 = vunpack.c.h.b16 %v66
    %v636 = vunpack.c.l.b16 %v67
    %v637 = vunpack.c.h.b16 %v67
    %v638 = vunpack.c.l.b16 %v68
    %v639 = vunpack.c.h.b16 %v68
    %v640 = vunpack.c.l.b16 %v69
    %v641 = vunpack.c.h.b16 %v69
    %v642 = vunpack.c.l.b16 %v70
    %v643 = vunpack.c.l.b16 %v71
    %v644 = vunpack.c.h.b16 %v71
    %v645 = vunpack.c.l.b16 %v72
    %v646 = vunpack.c.h.b16 %v72
    %v647 = vunpack.c.l.b16 %v73
    %v648 = vunpack.c.h.b16 %v73
    %v649 = vunpack.c.l.b16 %v74
    %v650 = vunpack.c.h.b16 %v74
    %v651 = vunpack.c.l.b16 %v75
    %v652 = vunpack.c.l.b16 %v76
    %v653 = vunpack.c.h.b16 %v76
    %v654 = vunpack.c.l.b16 %v77
    %v655 = vunpack.c.h.b16 %v77
    %v656 = vunpack.c.l.b16 %v78
    %v657 = vunpack.c.h.b16 %v78
    %v658 = vunpack.c.l.b16 %v79
    %v659 = vunpack.c.h.b16 %v79
    %v660 = vunpack.c.l.b16 %v80
    %v661 = vunpack.c.l.b16 %v81
    %v662 = vunpack.c.h.b16 %v81
    %v663 = vunpack.c.l.b16 %v82
    %v664 = vunpack.c.h.b16 %v82
    %v665 = vunpack.c.l.b16 %v83
    %v666 = vunpack.c.h.b16 %v83
    %v667 = vunpack.c.l.b16 %v84
    %v668 = vunpack.c.h.b16 %v84
    %v669 = vunpack.c.l.b16 %v85
    %v670 = vunpack.c.l.b16 %v86
    %v671 = vunpack.c.h.b16 %v86
    %v672 = vunpack.c.l.b16 %v87
    %v673 = vunpack.c.h.b16 %v87
    %v674 = vunpack.c.l.b16 %v88
    %v675 = vunpack.c.h.b16 %v88
    %v676 = vunpack.c.l.b16 %v89
    %v677 = vunpack.c.h.b16 %v89
    %v678 = vunpack.c.l.b16 %v90
    %v679 = vunpack.c.l.b16 %v91
    %v680 = vunpack.c.h.b16 %v91
    %v681 = vunpack.c.l.b16 %v92
    %v682 = vunpack.c.h.b16 %v92
    %v683 = vunpack.c.l.b16 %v93
    %v684 = vunpack.c.h.b16 %v93
    %v685 = vunpack.c.l.b16 %v94
    %v686 = vunpack.c.h.b16 %v94
    %v687 = vunpack.c.l.b16 %v95
    %v688 = vunpack.c.l.b16 %v96
    %v689 = vunpack.c.h.b16 %v96
    %v690 = vunpack.c.l.b16 %v97
    %v691 = vunpack.c.h.b16 %v97
    %v692 = vunpack.c.l.b16 %v98
    %v693 = vunpack.c.h.b16 %v98
    %v694 = vunpack.c.l.b16 %v99
    %v695 = vunpack.c.h.b16 %v99
    %v696 = vunpack.c.l.b16 %v100
    %v697 = vunpack.c.l.b16 %v101
    %v698 = vunpack.c.h.b16 %v101
    %v699 = vunpack.c.l.b16 %v102
    %v700 = vunpack.c.h.b16 %v102
    %v701 = vunpack.c.l.b16 %v103
    %v702 = vunpack.c.h.b16 %v103
    %v703 = vunpack.c.l.b16 %v104
    %v704 = vunpack.c.h.b16 %v104
    %v705 = vunpack.c.l.b16 %v105
    %v706 = vunpack.c.l.b16 %v106
    %v707 = vunpack.c.h.b16 %v106
    %v708 = vunpack.c.l.b16 %v107
    %v709 = vunpack.c.h.b16 %v107
    %v710 = vunpack.c.l.b16 %v108
    %v711 = vunpack.c.h.b16 %v108
    %v712 = vunpack.c.l.b16 %v109
    %v713 = vunpack.c.h.b16 %v109
    %v714 = vunpack.c.l.b16 %v110
    %v715 = vunpack.c.l.b16 %v111
    %v716 = vunpack.c.h.b16 %v111
    %v717 = vunpack.c.l.b16 %v112
    %v718 = vunpack.c.h.b16 %v112
    %v719 = vunpack.c.l.b16 %v113
    %v720 = vunpack.c.h.b16 %v113
    %v721 = vunpack.c.l.b16 %v114
    %v722 = vunpack.c.h.b16 %v114
    %v723 = vunpack.c.l.b16 %v115
    %v724 = vunpack.c.l.b16 %v116
    %v725 = vunpack.c.h.b16 %v116
    %v726 = vunpack.c.l.b16 %v117
    %v727 = vunpack.c.h.b16 %v117
    %v728 = vunpack.c.l.b16 %v118
    %v729 = vunpack.c.h.b16 %v118
    %v730 = vunpack.c.l.b16 %v119
    %v731 = vunpack.c.h.b16 %v119
    %v732 = vunpack.c.l.b16 %v120
    %v733 = vunpack.c.l.b16 %v121
    %v734 = vunpack.c.h.b16 %v121
    %v735 = vunpack.c.l.b16 %v122
    %v736 = vunpack.c.h.b16 %v122
    %v737 = vunpack.c.l.b16 %v123
    %v738 = vunpack.c.h.b16 %v123
    %v739 = vunpack.c.l.b16 %v124
    %v740 = vunpack.c.h.b16 %v124
    %v741 = vunpack.c.l.b16 %v125
    %v742 = vunpack.c.l.b16 %v126
    %v743 = vunpack.c.h.b16 %v126
    %v744 = vunpack.c.l.b16 %v127
    %v745 = vunpack.c.h.b16 %v127
    %v746 = vunpack.c.l.b16 %v128
    %v747 = vunpack.c.h.b16 %v128
    %v748 = vunpack.c.l.b16 %v129
    %v749 = vunpack.c.h.b16 %v129
    %v750 = vunpack.c.l.b16 %v130
    %v751 = vunpack.c.l.b16 %v131
    %v752 = vunpack.c.h.b16 %v131
    %v753 = vunpack.c.l.b16 %v132
    %v754 = vunpack.c.h.b16 %v132
    %v755 = vunpack.c.l.b16 %v133
    %v756 = vunpack.c.h.b16 %v133
    %v757 = vunpack.c.l.b16 %v134
    %v758 = vunpack.c.h.b16 %v134
    %v759 = vunpack.c.l.b16 %v135
    %v760 = vunpack.c.l.b16 %v136
    %v761 = vunpack.c.h.b16 %v136
    %v762 = vunpack.c.l.b16 %v137
    %v763 = vunpack.c.h.b16 %v137
    %v764 = vunpack.c.l.b16 %v138
    %v765 = vunpack.c.h.b16 %v138
    %v766 = vunpack.c.l.b16 %v139
    %v767 = vunpack.c.h.b16 %v139
    %v768 = vunpack.c.l.b16 %v140
    %v769 = vunpack.c.l.b16 %v141
    %v770 = vunpack.c.h.b16 %v141
    %v771 = vunpack.c.l.b16 %v142
    %v772 = vunpack.c.h.b16 %v142
    %v773 = vunpack.c.l.b16 %v143
    %v774 = vunpack.c.h.b16 %v143
    %v775 = vunpack.c.l.b16 %v144
    %v776 = vunpack.c.h.b16 %v144
    %v777 = vunpack.c.l.b16 %v145
    %v778 = vunpack.c.l.b16 %v146
    %v779 = vunpack.c.h.b16 %v146
    %v780 = vunpack.c.l.b16 %v147
    %v781 = vunpack.c.h.b16 %v147
    %v782 = vunpack.c.l.b16 %v148
    %v783 = vunpack.c.h.b16 %v148
    %v784 = vunpack.c.l.b16 %v149
    %v785 = vunpack.c.h.b16 %v149
    %v786 = vunpack.c.l.b16 %v150
    %v787 = vunpack.c.l.b16 %v151
    %v788 = vunpack.c.h.b16 %v151
    %v789 = vunpack.c.l.b16 %v152
    %v790 = vunpack.c.h.b16 %v152
    %v791 = vunpack.c.l.b16 %v153
    %v792 = vunpack.c.h.b16 %v153
    %v793 = vunpack.c.l.b16 %v154
    %v794 = vunpack.c.h.b16 %v154
    %v795 = vunpack.c.l.b16 %v155
    %v796 = vunpack.c.l.b16 %v156
    %v797 = vunpack.c.h.b16 %v156
    %v798 = vunpack.c.l.b16 %v157
    %v799 = vunpack.c.h.b16 %v157
    %v800 = vunpack.c.l.b16 %v158
    %v801 = vunpack.c.h.b16 %v158
    %v802 = vunpack.c.l.b16 %v159
    %v803 = vunpack.c.h.b16 %v159
    %v804 = vunpack.c.l.b16 %v160
    %v805 = vunpack.c.l.b16 %v161
    %v806 = vunpack.c.h.b16 %v161
    %v807 = vunpack.c.l.b16 %v162
    %v808 = vunpack.c.h.b16 %v162
    %v809 = vunpack.c.l.b16 %v163
    %v810 = vunpack.c.h.b16 %v163
    %v811 = vunpack.c.l.b16 %v164
    %v812 = vunpack.c.h.b16 %v164
    %v813 = vunpack.c.l.b16 %v165
    %v814 = vunpack.c.l.b16 %v166
    %v815 = vunpack.c.h.b16 %v166
    %v816 = vunpack.c.l.b16 %v167
    %v817 = vunpack.c.h.b16 %v167
    %v818 = vunpack.c.l.b16 %v168
    %v819 = vunpack.c.h.b16 %v168
    %v820 = vunpack.c.l.b16 %v169
    %v821 = vunpack.c.h.b16 %v169
    %v822 = vunpack.c.l.b16 %v170
    %v823 = vunpack.c.l.b16 %v171
    %v824 = vunpack.c.h.b16 %v171
    %v825 = vunpack.c.l.b16 %v172
    %v826 = vunpack.c.h.b16 %v172
    %v827 = vunpack.c.l.b16 %v173
    %v828 = vunpack.c.h.b16 %v173
    %v829 = vunpack.c.l.b16 %v174
    %v830 = vunpack.c.h.b16 %v174
    %v831 = vunpack.c.l.b16 %v175
    %v832 = vunpack.c.l.b16 %v176
    %v833 = vunpack.c.h.b16 %v176
    %v834 = vunpack.c.l.b16 %v177
    %v835 = vunpack.c.h.b16 %v177
    %v836 = vunpack.c.l.b16 %v178
    %v837 = vunpack.c.h.b16 %v178
    %v838 = vunpack.c.l.b16 %v179
    %v839 = vunpack.c.h.b16 %v179
    %v840 = vunpack.c.l.b16 %v180
    %v841 = vunpack.c.l.b16 %v181
    %v842 = vunpack.c.h.b16 %v181
    %v843 = vunpack.c.l.b16 %v182
    %v844 = vunpack.c.h.b16 %v182
    %v845 = vunpack.c.l.b16 %v183
    %v846 = vunpack.c.h.b16 %v183
    %v847 = vunpack.c.l.b16 %v184
    %v848 = vunpack.c.h.b16 %v184
    %v849 = vunpack.c.l.b16 %v185
    %v850 = vunpack.c.l.b16 %v186
    %v851 = vunpack.c.h.b16 %v186
    %v852 = vunpack.c.l.b16 %v187
    %v853 = vunpack.c.h.b16 %v187
    %v854 = vunpack.c.l.b16 %v188
    %v855 = vunpack.c.h.b16 %v188
    %v856 = vunpack.c.l.b16 %v189
    %v857 = vunpack.c.h.b16 %v189
    %v858 = vunpack.c.l.b16 %v190
    %v859 = vunpack.c.l.b16 %v191
    %v860 = vunpack.c.h.b16 %v191
    %v861 = vunpack.c.l.b16 %v192
    %v862 = vunpack.c.h.b16 %v192
    %v863 = vunpack.c.l.b16 %v193
    %v864 = vunpack.c.h.b16 %v193
    %v865 = vunpack.c.l.b16 %v194
    %v866 = vunpack.c.h.b16 %v194
    %v867 = vunpack.c.l.b16 %v195
    %v868 = vunpack.c.l.b16 %v196
    %v869 = vunpack.c.h.b16 %v196
    %v870 = vunpack.c.l.b16 %v197
    %v871 = vunpack.c.h.b16 %v197
    %v872 = vunpack.c.l.b16 %v198
    %v873 = vunpack.c.h.b16 %v198
    %v874 = vunpack.c.l.b16 %v199
    %v875 = vunpack.c.h.b16 %v199
    %v876 = vunpack.c.l.b16 %v200
    %v877 = vunpack.c.l.b16 %v201
    %v878 = vunpack.c.h.b16 %v201
    %v879 = vunpack.c.l.b16 %v202
    %v880 = vunpack.c.h.b16 %v202
    %v881 = vunpack.c.l.b16 %v203
    %v882 = vunpack.c.h.b16 %v203
    %v883 = vunpack.c.l.b16 %v204
    %v884 = vunpack.c.h.b16 %v204
    %v885 = vunpack.c.l.b16 %v205
    %v886 = vunpack.c.l.b16 %v206
    %v887 = vunpack.c.h.b16 %v206
    %v888 = vunpack.c.l.b16 %v207
    %v889 = vunpack.c.h.b16 %v207
    %v890 = vunpack.c.l.b16 %v208
    %v891 = vunpack.c.h.b16 %v208
    %v892 = vunpack.c.l.b16 %v209
    %v893 = vunpack.c.h.b16 %v209
    %v894 = vunpack.c.l.b16 %v210
    %v895 = vunpack.c.l.b16 %v211
    %v896 = vunpack.c.h.b16 %v211
    %v897 = vunpack.c.l.b16 %v212
    %v898 = vunpack.c.h.b16 %v212
    %v899 = vunpack.c.l.b16 %v213
    %v900 = vunpack.c.h.b16 %v213
    %v901 = vunpack.c.l.b16 %v214
    %v902 = vunpack.c.h.b16 %v214
    %v903 = vunpack.c.l.b16 %v215
    %v904 = vunpack.c.l.b16 %v216
    %v905 = vunpack.c.h.b16 %v216
    %v906 = vunpack.c.l.b16 %v217
    %v907 = vunpack.c.h.b16 %v217
    %v908 = vunpack.c.l.b16 %v218
    %v909 = vunpack.c.h.b16 %v218
    %v910 = vunpack.c.l.b16 %v219
    %v911 = vunpack.c.h.b16 %v219
    %v912 = vunpack.c.l.b16 %v220
    %v913 = vunpack.c.l.b16 %v221
    %v914 = vunpack.c.h.b16 %v221
    %v915 = vunpack.c.l.b16 %v222
    %v916 = vunpack.c.h.b16 %v222
    %v917 = vunpack.c.l.b16 %v223
    %v918 = vunpack.c.h.b16 %v223
    %v919 = vunpack.c.l.b16 %v224
    %v920 = vunpack.c.h.b16 %v224
    %v921 = vunpack.c.l.b16 %v225
    %v922 = vunpack.c.l.b16 %v226
    %v923 = vunpack.c.h.b16 %v226
    %v924 = vunpack.c.l.b16 %v227
    %v925 = vunpack.c.h.b16 %v227
    %v926 = vunpack.c.l.b16 %v228
    %v927 = vunpack.c.h.b16 %v228
    %v928 = vunpack.c.l.b16 %v229
    %v929 = vunpack.c.h.b16 %v229
    %v930 = vunpack.c.l.b16 %v230
    %v931 = vunpack.c.l.b16 %v231
    %v932 = vunpack.c.h.b16 %v231
    %v933 = vunpack.c.l.b16 %v232
    %v934 = vunpack.c.h.b16 %v232
    %v935 = vunpack.c.l.b16 %v233
    %v936 = vunpack.c.h.b16 %v233
    %v937 = vunpack.c.l.b16 %v234
    %v938 = vunpack.c.h.b16 %v234
    %v939 = vunpack.c.l.b16 %v235
    %v940 = vunpack.c.l.b16 %v236
    %v941 = vunpack.c.h.b16 %v236
    %v942 = vunpack.c.l.b16 %v237
    %v943 = vunpack.c.h.b16 %v237
    %v944 = vunpack.c.l.b16 %v238
    %v945 = vunpack.c.h.b16 %v238
    %v946 = vunpack.c.l.b16 %v239
    %v947 = vunpack.c.h.b16 %v239
    %v948 = vunpack.c.l.b16 %v240
    %v949 = vunpack.c.l.b16 %v241
    %v950 = vunpack.c.h.b16 %v241
    %v951 = vunpack.c.l.b16 %v242
    %v952 = vunpack.c.h.b16 %v242
    %v953 = vunpack.c.l.b16 %v243
    %v954 = vunpack.c.h.b16 %v243
    %v955 = vunpack.c.l.b16 %v244
    %v956 = vunpack.c.h.b16 %v244
    %v957 = vunpack.c.l.b16 %v245
    %v958 = vunpack.c.l.b16 %v246
    %v959 = vunpack.c.h.b16 %v246
    %v960 = vunpack.c.l.b16 %v247
    %v961 = vunpack.c.h.b16 %v247
    %v962 = vunpack.c.l.b16 %v248
    %v963 = vunpack.c.h.b16 %v248
    %v964 = vunpack.c.l.b16 %v249
    %v965 = vunpack.c.h.b16 %v249
    %v966 = vunpack.c.l.b16 %v250
    %v967 = vunpack.c.l.b16 %v251
    %v968 = vunpack.c.h.b16 %v251
    %v969 = vunpack.c.l.b16 %v252
    %v970 = vunpack.c.h.b16 %v252
    %v971 = vunpack.c.l.b16 %v253
    %v972 = vunpack.c.h.b16 %v253
    %v973 = vunpack.c.l.b16 %v254
    %v974 = vunpack.c.h.b16 %v254
    %v975 = vunpack.c.l.b16 %v255
    %v976 = vunpack.c.l.b16 %v256
    %v977 = vunpack.c.h.b16 %v256
    %v978 = vunpack.c.l.b16 %v257
    %v979 = vunpack.c.h.b16 %v257
    %v980 = vunpack.c.l.b16 %v258
    %v981 = vunpack.c.h.b16 %v258
    %v982 = vunpack.c.l.b16 %v259
    %v983 = vunpack.c.h.b16 %v259
    %v984 = vunpack.c.l.b16 %v260
    %v985 = vunpack.c.l.b16 %v261
    %v986 = vunpack.c.h.b16 %v261
    %v987 = vunpack.c.l.b16 %v262
    %v988 = vunpack.c.h.b16 %v262
    %v989 = vunpack.c.l.b16 %v263
    %v990 = vunpack.c.h.b16 %v263
    %v991 = vunpack.c.l.b16 %v264
    %v992 = vunpack.c.h.b16 %v264
    %v993 = vunpack.c.l.b16 %v265
    %v994 = vunpack.c.l.b16 %v266
    %v995 = vunpack.c.h.b16 %v266
    %v996 = vunpack.c.l.b16 %v267
    %v997 = vunpack.c.h.b16 %v267
    %v998 = vunpack.c.l.b16 %v268
    %v999 = vunpack.c.h.b16 %v268
    %v1000 = vunpack.c.l.b16 %v269
    %v1001 = vunpack.c.h.b16 %v269
    %v1002 = vunpack.c.l.b16 %v270
    %v1003 = vunpack.c.l.b16 %v271
    %v1004 = vunpack.c.h.b16 %v271
    %v1005 = vunpack.c.l.b16 %v272
    %v1006 = vunpack.c.h.b16 %v272
    %v1007 = vunpack.c.l.b16 %v273
    %v1008 = vunpack.c.h.b16 %v273
    %v1009 = vunpack.c.l.b16 %v274
    %v1010 = vunpack.c.h.b16 %v274
    %v1011 = vunpack.c.l.b16 %v275
    %v1012 = vunpack.c.l.b16 %v276
    %v1013 = vunpack.c.h.b16 %v276
    %v1014 = vunpack.c.l.b16 %v277
    %v1015 = vunpack.c.h.b16 %v277
    %v1016 = vunpack.c.l.b16 %v278
    %v1017 = vunpack.c.h.b16 %v278
    %v1018 = vunpack.c.l.b16 %v279
    %v1019 = vunpack.c.h.b16 %v279
    %v1020 = vunpack.c.l.b16 %v280
    %v1021 = vunpack.c.l.b16 %v281
    %v1022 = vunpack.c.h.b16 %v281
    %v1023 = vunpack.c.l.b16 %v282
    %v1024 = vunpack.c.h.b16 %v282
    %v1025 = vunpack.c.l.b16 %v283
    %v1026 = vunpack.c.h.b16 %v283
    %v1027 = vunpack.c.l.b16 %v284
    %v1028 = vunpack.c.h.b16 %v284
    %v1029 = vunpack.c.l.b16 %v285
    %v1030 = vunpack.c.l.b16 %v286
    %v1031 = vunpack.c.h.b16 %v286
    %v1032 = vunpack.c.l.b16 %v287
    %v1033 = vunpack.c.h.b16 %v287
    %v1034 = vunpack.c.l.b16 %v288
    %v1035 = vunpack.c.h.b16 %v288
    %v1036 = vunpack.c.l.b16 %v289
    %v1037 = vunpack.c.h.b16 %v289
    %v1038 = vunpack.c.l.b16 %v290
    %v1039 = vpack.c.b16 %v616, %v607
    %v1040 = vpack.c.b16 %v617, %v608
    %v1041 = vpack.c.b16 %v618, %v609
    %v1042 = vpack.c.b16 %v619, %v610
    %v1043 = vpack.c.b16 %v620, %v611
    %v1044 = vpack.c.b16 %v621, %v612
    %v1045 = vpack.c.b16 %v622, %v613
    %v1046 = vpack.c.b16 %v623, %v614
    %v1047 = vpack.c.b16 %v624, %v615
    %v1048 = vpack.c.b16 %v634, %v625
    %v1049 = vpack.c.b16 %v635, %v626
    %v1050 = vpack.c.b16 %v636, %v627
    %v1051 = vpack.c.b16 %v637, %v628
    %v1052 = vpack.c.b16 %v638, %v629
    %v1053 = vpack.c.b16 %v639, %v630
    %v1054 = vpack.c.b16 %v640, %v631
    %v1055 = vpack.c.b16 %v641, %v632
    %v1056 = vpack.c.b16 %v642, %v633
    %v1057 = vpack.c.b16 %v652, %v643
    %v1058 = vpack.c.b16 %v653, %v644
    %v1059 = vpack.c.b16 %v654, %v645
    %v1060 = vpack.c.b16 %v655, %v646
    %v1061 = vpack.c.b16 %v656, %v647
    %v1062 = vpack.c.b16 %v657, %v648
    %v1063 = vpack.c.b16 %v658, %v649
    %v1064 = vpack.c.b16 %v659, %v650
    %v1065 = vpack.c.b16 %v660, %v651
    %v1066 = vpack.c.b16 %v670, %v661
    %v1067 = vpack.c.b16 %v671, %v662
    %v1068 = vpack.c.b16 %v672, %v663
    %v1069 = vpack.c.b16 %v673, %v664
    %v1070 = vpack.c.b16 %v674, %v665
    %v1071 = vpack.c.b16 %v675, %v666
    %v1072 = vpack.c.b16 %v676, %v667
    %v1073 = vpack.c.b16 %v677, %v668
    %v1074 = vpack.c.b16 %v678, %v669
    %v1075 = vpack.c.b16 %v688, %v679
    %v1076 = vpack.c.b16 %v689, %v680
    %v1077 = vpack.c.b16 %v690, %v681
    %v1078 = vpack.c.b16 %v691, %v682
    %v1079 = vpack.c.b16 %v692, %v683
    %v1080 = vpack.c.b16 %v693, %v684
    %v1081 = vpack.c.b16 %v694, %v685
    %v1082 = vpack.c.b16 %v695, %v686
    %v1083 = vpack.c.b16 %v696, %v687
    %v1084 = vpack.c.b16 %v706, %v697
    %v1085 = vpack.c.b16 %v707, %v698
    %v1086 = vpack.c.b16 %v708, %v699
    %v1087 = vpack.c.b16 %v709, %v700
    %v1088 = vpack.c.b16 %v710, %v701
    %v1089 = vpack.c.b16 %v711, %v702
    %v1090 = vpack.c.b16 %v712, %v703
    %v1091 = vpack.c.b16 %v713, %v704
    %v1092 = vpack.c.b16 %v714, %v705
    %v1093 = vpack.c.b16 %v724, %v715
    %v1094 = vpack.c.b16 %v725, %v716
    %v1095 = vpack.c.b16 %v726, %v717
    %v1096 = vpack.c.b16 %v727, %v718
    %v1097 = vpack.c.b16 %v728, %v719
    %v1098 = vpack.c.b16 %v729, %v720
    %v1099 = vpack.c.b16 %v730, %v721
    %v1100 = vpack.c.b16 %v731, %v722
    %v1101 = vpack.c.b16 %v732, %v723
    %v1102 = vpack.c.b16 %v742, %v733
    %v1103 = vpack.c.b16 %v743, %v734
    %v1104 = vpack.c.b16 %v744, %v735
    %v1105 = vpack.c.b16 %v745, %v736
    %v1106 = vpack.c.b16 %v746, %v737
    %v1107 = vpack.c.b16 %v747, %v738
    %v1108 = vpack.c.b16 %v748, %v739
    %v1109 = vpack.c.b16 %v749, %v740
    %v1110 = vpack.c.b16 %v750, %v741
    %v1111 = vpack.c.b16 %v760, %v751
    %v1112 = vpack.c.b16 %v761, %v752
    %v1113 = vpack.c.b16 %v762, %v753
    %v1114 = vpack.c.b16 %v763, %v754
    %v1115 = vpack.c.b16 %v764, %v755
    %v1116 = vpack.c.b16 %v765, %v756
    %v1117 = vpack.c.b16 %v766, %v757
    %v1118 = vpack.c.b16 %v767, %v758
    %v1119 = vpack.c.b16 %v768, %v759
    %v1120 = vpack.c.b16 %v778, %v769
    %v1121 = vpack.c.b16 %v779, %v770
    %v1122 = vpack.c.b16 %v780, %v771
    %v1123 = vpack.c.b16 %v781, %v772
    %v1124 = vpack.c.b16 %v782, %v773
    %v1125 = vpack.c.b16 %v783, %v774
    %v1126 = vpack.c.b16 %v784, %v775
    %v1127 = vpack.c.b16 %v785, %v776
    %v1128 = vpack.c.b16 %v786, %v777
    %v1129 = vpack.c.b16 %v796, %v787
    %v1130 = vpack.c.b16 %v797, %v788
    %v1131 = vpack.c.b16 %v798, %v789
    %v1132 = vpack.c.b16 %v799, %v790
    %v1133 = vpack.c.b16 %v800, %v791
    %v1134 = vpack.c.b16 %v801, %v792
    %v1135 = vpack.c.b16 %v802, %v793
    %v1136 = vpack.c.b16 %v803, %v794
    %v1137 = vpack.c.b16 %v804, %v795
    %v1138 = vpack.c.b16 %v814, %v805
    %v1139 = vpack.c.b16 %v815, %v806
    %v1140 = vpack.c.b16 %v816, %v807
    %v1141 = vpack.c.b16 %v817, %v808
    %v1142 = vpack.c.b16 %v818, %v809
    %v1143 = vpack.c.b16 %v819, %v810
    %v1144 = vpack.c.b16 %v820, %v811
    %v1145 = vpack.c.b16 %v821, %v812
    %v1146 = vpack.c.b16 %v822, %v813
    %v1147 = vpack.c.b16 %v832, %v823
    %v1148 = vpack.c.b16 %v833, %v824
    %v1149 = vpack.c.b16 %v834, %v825
    %v1150 = vpack.c.b16 %v835, %v826
    %v1151 = vpack.c.b16 %v836, %v827
    %v1152 = vpack.c.b16 %v837, %v828
    %v1153 = vpack.c.b16 %v838, %v829
    %v1154 = vpack.c.b16 %v839, %v830
    %v1155 = vpack.c.b16 %v840, %v831
    %v1156 = vpack.c.b16 %v850, %v841
    %v1157 = vpack.c.b16 %v851, %v842
    %v1158 = vpack.c.b16 %v852, %v843
    %v1159 = vpack.c.b16 %v853, %v844
    %v1160 = vpack.c.b16 %v854, %v845
    %v1161 = vpack.c.b16 %v855, %v846
    %v1162 = vpack.c.b16 %v856, %v847
    %v1163 = vpack.c.b16 %v857, %v848
    %v1164 = vpack.c.b16 %v858, %v849
    %v1165 = vpack.c.b16 %v868, %v859
    %v1166 = vpack.c.b16 %v869, %v860
    %v1167 = vpack.c.b16 %v870, %v861
    %v1168 = vpack.c.b16 %v871, %v862
    %v1169 = vpack.c.b16 %v872, %v863
    %v1170 = vpack.c.b16 %v873, %v864
    %v1171 = vpack.c.b16 %v874, %v865
    %v1172 = vpack.c.b16 %v875, %v866
    %v1173 = vpack.c.b16 %v876, %v867
    %v1174 = vpack.c.b16 %v886, %v877
    %v1175 = vpack.c.b16 %v887, %v878
    %v1176 = vpack.c.b16 %v888, %v879
    %v1177 = vpack.c.b16 %v889, %v880
    %v1178 = vpack.c.b16 %v890, %v881
    %v1179 = vpack.c.b16 %v891, %v882
    %v1180 = vpack.c.b16 %v892, %v883
    %v1181 = vpack.c.b16 %v893, %v884
    %v1182 = vpack.c.b16 %v894, %v885
    %v1183 = vpack.c.b16 %v904, %v895
    %v1184 = vpack.c.b16 %v905, %v896
    %v1185 = vpack.c.b16 %v906, %v897
    %v1186 = vpack.c.b16 %v907, %v898
    %v1187 = vpack.c.b16 %v908, %v899
    %v1188 = vpack.c.b16 %v909, %v900
    %v1189 = vpack.c.b16 %v910, %v901
    %v1190 = vpack.c.b16 %v911, %v902
    %v1191 = vpack.c.b16 %v912, %v903
    %v1192 = vpack.c.b16 %v922, %v913
    %v1193 = vpack.c.b16 %v923, %v914
    %v1194 = vpack.c.b16 %v924, %v915
    %v1195 = vpack.c.b16 %v925, %v916
    %v1196 = vpack.c.b16 %v926, %v917
    %v1197 = vpack.c.b16 %v927, %v918
    %v1198 = vpack.c.b16 %v928, %v919
    %v1199 = vpack.c.b16 %v929, %v920
    %v1200 = vpack.c.b16 %v930, %v921
    %v1201 = vpack.c.b16 %v940, %v931
    %v1202 = vpack.c.b16 %v941, %v932
    %v1203 = vpack.c.b16 %v942, %v933
    %v1204 = vpack.c.b16 %v943, %v934
    %v1205 = vpack.c.b16 %v944, %v935
    %v1206 = vpack.c.b16 %v945, %v936
    %v1207 = vpack.c.b16 %v946, %v937
    %v1208 = vpack.c.b16 %v947, %v938
    %v1209 = vpack.c.b16 %v948, %v939
    %v1210 = vpack.c.b16 %v958, %v949
    %v1211 = vpack.c.b16 %v959, %v950
    %v1212 = vpack.c.b16 %v960, %v951
    %v1213 = vpack.c.b16 %v961, %v952
    %v1214 = vpack.c.b16 %v962, %v953
    %v1215 = vpack.c.b16 %v963, %v954
    %v1216 = vpack.c.b16 %v964, %v955
    %v1217 = vpack.c.b16 %v965, %v956
    %v1218 = vpack.c.b16 %v966, %v957
    %v1219 = vpack.c.b16 %v976, %v967
    %v1220 = vpack.c.b16 %v977, %v968
    %v1221 = vpack.c.b16 %v978, %v969
    %v1222 = vpack.c.b16 %v979, %v970
    %v1223 = vpack.c.b16 %v980, %v971
    %v1224 = vpack.c.b16 %v981, %v972
    %v1225 = vpack.c.b16 %v982, %v973
    %v1226 = vpack.c.b16 %v983, %v974
    %v1227 = vpack.c.b16 %v984, %v975
    %v1228 = vpack.c.b16 %v994, %v985
    %v1229 = vpack.c.b16 %v995, %v986
    %v1230 = vpack.c.b16 %v996, %v987
    %v1231 = vpack.c.b16 %v997, %v988
    %v1232 = vpack.c.b16 %v998, %v989
    %v1233 = vpack.c.b16 %v999, %v990
    %v1234 = vpack.c.b16 %v1000, %v991
    %v1235 = vpack.c.b16 %v1001, %v992
    %v1236 = vpack.c.b16 %v1002, %v993
    %v1237 = vpack.c.b16 %v1012, %v1003
    %v1238 = vpack.c.b16 %v1013, %v1004
    %v1239 = vpack.c.b16 %v1014, %v1005
    %v1240 = vpack.c.b16 %v1015, %v1006
    %v1241 = vpack.c.b16 %v1016, %v1007
    %v1242 = vpack.c.b16 %v1017, %v1008
    %v1243 = vpack.c.b16 %v1018, %v1009
    %v1244 = vpack.c.b16 %v1019, %v1010
    %v1245 = vpack.c.b16 %v1020, %v1011
    %v1246 = vpack.c.b16 %v1030, %v1021
    %v1247 = vpack.c.b16 %v1031, %v1022
    %v1248 = vpack.c.b16 %v1032, %v1023
    %v1249 = vpack.c.b16 %v1033, %v1024
    %v1250 = vpack.c.b16 %v1034, %v1025
    %v1251 = vpack.c.b16 %v1035, %v1026
    %v1252 = vpack.c.b16 %v1036, %v1027
    %v1253 = vpack.c.b16 %v1037, %v1028
    %v1254 = vpack.c.b16 %v1038, %v1029
    %1471 = vmatprep.subr.bf16.mxu0 %v1040
    %1472 = vmatpush1.bf16.msra.mxu0 %v1039
    %1473 = vmatprep.subr.bf16.mxu0 %v1049
    %1474 = vmatpush1.bf16.msra.mxu0 %v1048
    %1475 = vmatprep.subr.bf16.mxu0 %v1058
    %1476 = vmatpush1.bf16.msra.mxu0 %v1057
    %1477 = vmatprep.subr.bf16.mxu0 %v1067
    %1478 = vmatpush1.bf16.msra.mxu0 %v1066
    %1479 = vmatprep.subr.bf16.mxu0 %v1076
    %1480 = vmatpush1.bf16.msra.mxu0 %v1075
    %1481 = vmatprep.subr.bf16.mxu0 %v1085
    %1482 = vmatpush1.bf16.msra.mxu0 %v1084
    %1483 = vmatprep.subr.bf16.mxu0 %v1094
    %1484 = vmatpush1.bf16.msra.mxu0 %v1093
    %1485 = vmatprep.subr.bf16.mxu0 %v1103
    %1486 = vmatpush1.bf16.msra.mxu0 %v1102
    %1487 = vmatprep.subr.bf16.mxu0 %v1112
    %1488 = vmatpush1.bf16.msra.mxu0 %v1111
    %1489 = vmatprep.subr.bf16.mxu0 %v1121
    %1490 = vmatpush1.bf16.msra.mxu0 %v1120
    %1491 = vmatprep.subr.bf16.mxu0 %v1130
    %1492 = vmatpush1.bf16.msra.mxu0 %v1129
    %1493 = vmatprep.subr.bf16.mxu0 %v1139
    %1494 = vmatpush1.bf16.msra.mxu0 %v1138
    %1495 = vmatprep.subr.bf16.mxu0 %v1148
    %1496 = vmatpush1.bf16.msra.mxu0 %v1147
    %1497 = vmatprep.subr.bf16.mxu0 %v1157
    %1498 = vmatpush1.bf16.msra.mxu0 %v1156
    %1499 = vmatprep.subr.bf16.mxu0 %v1166
    %1500 = vmatpush1.bf16.msra.mxu0 %v1165
    %1501 = vmatprep.subr.bf16.mxu0 %v1175
    %1502 = vmatpush1.bf16.msra.mxu0 %v1174
    %1503 = vmatprep.mubr.bf16.mxu0 %v362
    %1504 = vmatmul.mubr.bf16.gmra.mrb[0].mxu0 %v355
    %v1505 = vpop.f32.mrb[0].mxu0
    %v1506 = vadd.f32 %v298, %v1505
    %v1507 = vpop.f32.mrb[0].mxu0
    %v1508 = vadd.f32 %v302, %v1507
    %v1509 = vpop.f32.mrb[0].mxu0
    %v1510 = vpop.f32.mrb[0].mxu0
    %1511 = vdwg.mxu0
    %1512 = vmatprep.subr.bf16.mxu0 %v1184
    %1513 = vmatpush1.bf16.msra.mxu0 %v1183
    %1514 = vmatprep.subr.bf16.mxu0 %v1193
    %1515 = vmatpush1.bf16.msra.mxu0 %v1192
    %1516 = vmatprep.subr.bf16.mxu0 %v1202
    %1517 = vmatpush1.bf16.msra.mxu0 %v1201
    %1518 = vmatprep.subr.bf16.mxu0 %v1211
    %1519 = vmatpush1.bf16.msra.mxu0 %v1210
    %1520 = vmatprep.subr.bf16.mxu0 %v1220
    %1521 = vmatpush1.bf16.msra.mxu0 %v1219
    %1522 = vmatprep.subr.bf16.mxu0 %v1229
    %1523 = vmatpush1.bf16.msra.mxu0 %v1228
    %1524 = vmatprep.subr.bf16.mxu0 %v1238
    %1525 = vmatpush1.bf16.msra.mxu0 %v1237
    %1526 = vmatprep.subr.bf16.mxu0 %v1247
    %1527 = vmatpush1.bf16.msra.mxu0 %v1246
    %1528 = vmatprep.subr.bf16.mxu0 0
    %1529 = vmatpush1.bf16.msra.mxu0 0
    %1530 = vmatprep.subr.bf16.mxu0 0
    %1531 = vmatpush1.bf16.msra.mxu0 0
    %1532 = vmatprep.subr.bf16.mxu0 0
    %1533 = vmatpush1.bf16.msra.mxu0 0
    %1534 = vmatprep.subr.bf16.mxu0 0
    %1535 = vmatpush1.bf16.msra.mxu0 0
    %1536 = vmatprep.subr.bf16.mxu0 0
    %1537 = vmatpush1.bf16.msra.mxu0 0
    %1538 = vmatprep.subr.bf16.mxu0 0
    %1539 = vmatpush1.bf16.msra.mxu0 0
    %1540 = vmatprep.subr.bf16.mxu0 0
    %1541 = vmatpush1.bf16.msra.mxu0 0
    %1542 = vmatprep.subr.bf16.mxu0 0
    %1543 = vmatpush1.bf16.msra.mxu0 0
    %1544 = vmatprep.mubr.bf16.mxu0 0
    %1545 = vmatmul.mubr.bf16.gmra.mrb[0].mxu0 %v363
    %v1546 = vpop.f32.mrb[0].mxu0
    %v1547 = vadd.f32 %v1506, %v1546
    %v1548 = vpop.f32.mrb[0].mxu0
    %v1549 = vadd.f32 %v1508, %v1548
    %v1550 = vpop.f32.mrb[0].mxu0
    %v1551 = vpop.f32.mrb[0].mxu0
    %1552 = vdwg.mxu0
    %1553 = vmatprep.subr.bf16.mxu0 %v1042
    %1554 = vmatpush1.bf16.msra.mxu0 %v1041
    %1555 = vmatprep.subr.bf16.mxu0 %v1051
    %1556 = vmatpush1.bf16.msra.mxu0 %v1050
    %1557 = vmatprep.subr.bf16.mxu0 %v1060
    %1558 = vmatpush1.bf16.msra.mxu0 %v1059
    %1559 = vmatprep.subr.bf16.mxu0 %v1069
    %1560 = vmatpush1.bf16.msra.mxu0 %v1068
    %1561 = vmatprep.subr.bf16.mxu0 %v1078
    %1562 = vmatpush1.bf16.msra.mxu0 %v1077
    %1563 = vmatprep.subr.bf16.mxu0 %v1087
    %1564 = vmatpush1.bf16.msra.mxu0 %v1086
    %1565 = vmatprep.subr.bf16.mxu0 %v1096
    %1566 = vmatpush1.bf16.msra.mxu0 %v1095
    %1567 = vmatprep.subr.bf16.mxu0 %v1105
    %1568 = vmatpush1.bf16.msra.mxu0 %v1104
    %1569 = vmatprep.subr.bf16.mxu0 %v1114
    %1570 = vmatpush1.bf16.msra.mxu0 %v1113
    %1571 = vmatprep.subr.bf16.mxu0 %v1123
    %1572 = vmatpush1.bf16.msra.mxu0 %v1122
    %1573 = vmatprep.subr.bf16.mxu0 %v1132
    %1574 = vmatpush1.bf16.msra.mxu0 %v1131
    %1575 = vmatprep.subr.bf16.mxu0 %v1141
    %1576 = vmatpush1.bf16.msra.mxu0 %v1140
    %1577 = vmatprep.subr.bf16.mxu0 %v1150
    %1578 = vmatpush1.bf16.msra.mxu0 %v1149
    %1579 = vmatprep.subr.bf16.mxu0 %v1159
    %1580 = vmatpush1.bf16.msra.mxu0 %v1158
    %1581 = vmatprep.subr.bf16.mxu0 %v1168
    %1582 = vmatpush1.bf16.msra.mxu0 %v1167
    %1583 = vmatprep.subr.bf16.mxu0 %v1177
    %1584 = vmatpush1.bf16.msra.mxu0 %v1176
    %1585 = vmatprep.mubr.bf16.mxu0 %v362
    %1586 = vmatmul.mubr.bf16.gmra.mrb[0].mxu0 %v355
    %v1587 = vpop.f32.mrb[0].mxu0
    %v1588 = vadd.f32 %v306, %v1587
    %v1589 = vpop.f32.mrb[0].mxu0
    %v1590 = vadd.f32 %v310, %v1589
    %v1591 = vpop.f32.mrb[0].mxu0
    %v1592 = vpop.f32.mrb[0].mxu0
    %1593 = vdwg.mxu0
    %1594 = vmatprep.subr.bf16.mxu0 %v1186
    %1595 = vmatpush1.bf16.msra.mxu0 %v1185
    %1596 = vmatprep.subr.bf16.mxu0 %v1195
    %1597 = vmatpush1.bf16.msra.mxu0 %v1194
    %1598 = vmatprep.subr.bf16.mxu0 %v1204
    %1599 = vmatpush1.bf16.msra.mxu0 %v1203
    %1600 = vmatprep.subr.bf16.mxu0 %v1213
    %1601 = vmatpush1.bf16.msra.mxu0 %v1212
    %1602 = vmatprep.subr.bf16.mxu0 %v1222
    %1603 = vmatpush1.bf16.msra.mxu0 %v1221
    %1604 = vmatprep.subr.bf16.mxu0 %v1231
    %1605 = vmatpush1.bf16.msra.mxu0 %v1230
    %1606 = vmatprep.subr.bf16.mxu0 %v1240
    %1607 = vmatpush1.bf16.msra.mxu0 %v1239
    %1608 = vmatprep.subr.bf16.mxu0 %v1249
    %1609 = vmatpush1.bf16.msra.mxu0 %v1248
    %1610 = vmatprep.subr.bf16.mxu0 0
    %1611 = vmatpush1.bf16.msra.mxu0 0
    %1612 = vmatprep.subr.bf16.mxu0 0
    %1613 = vmatpush1.bf16.msra.mxu0 0
    %1614 = vmatprep.subr.bf16.mxu0 0
    %1615 = vmatpush1.bf16.msra.mxu0 0
    %1616 = vmatprep.subr.bf16.mxu0 0
    %1617 = vmatpush1.bf16.msra.mxu0 0
    %1618 = vmatprep.subr.bf16.mxu0 0
    %1619 = vmatpush1.bf16.msra.mxu0 0
    %1620 = vmatprep.subr.bf16.mxu0 0
    %1621 = vmatpush1.bf16.msra.mxu0 0
    %1622 = vmatprep.subr.bf16.mxu0 0
    %1623 = vmatpush1.bf16.msra.mxu0 0
    %1624 = vmatprep.subr.bf16.mxu0 0
    %1625 = vmatpush1.bf16.msra.mxu0 0
    %1626 = vmatprep.mubr.bf16.mxu0 0
    %1627 = vmatmul.mubr.bf16.gmra.mrb[0].mxu0 %v363
    %v1628 = vpop.f32.mrb[0].mxu0
    %v1629 = vadd.f32 %v1588, %v1628
    %v1630 = vpop.f32.mrb[0].mxu0
    %v1631 = vadd.f32 %v1590, %v1630
    %v1632 = vpop.f32.mrb[0].mxu0
    %v1633 = vpop.f32.mrb[0].mxu0
    %1634 = vdwg.mxu0
    %1635 = vmatprep.subr.bf16.mxu0 %v1044
    %1636 = vmatpush1.bf16.msra.mxu0 %v1043
    %1637 = vmatprep.subr.bf16.mxu0 %v1053
    %1638 = vmatpush1.bf16.msra.mxu0 %v1052
    %1639 = vmatprep.subr.bf16.mxu0 %v1062
    %1640 = vmatpush1.bf16.msra.mxu0 %v1061
    %1641 = vmatprep.subr.bf16.mxu0 %v1071
    %1642 = vmatpush1.bf16.msra.mxu0 %v1070
    %1643 = vmatprep.subr.bf16.mxu0 %v1080
    %1644 = vmatpush1.bf16.msra.mxu0 %v1079
    %1645 = vmatprep.subr.bf16.mxu0 %v1089
    %1646 = vmatpush1.bf16.msra.mxu0 %v1088
    %1647 = vmatprep.subr.bf16.mxu0 %v1098
    %1648 = vmatpush1.bf16.msra.mxu0 %v1097
    %1649 = vmatprep.subr.bf16.mxu0 %v1107
    %1650 = vmatpush1.bf16.msra.mxu0 %v1106
    %1651 = vmatprep.subr.bf16.mxu0 %v1116
    %1652 = vmatpush1.bf16.msra.mxu0 %v1115
    %1653 = vmatprep.subr.bf16.mxu0 %v1125
    %1654 = vmatpush1.bf16.msra.mxu0 %v1124
    %1655 = vmatprep.subr.bf16.mxu0 %v1134
    %1656 = vmatpush1.bf16.msra.mxu0 %v1133
    %1657 = vmatprep.subr.bf16.mxu0 %v1143
    %1658 = vmatpush1.bf16.msra.mxu0 %v1142
    %1659 = vmatprep.subr.bf16.mxu0 %v1152
    %1660 = vmatpush1.bf16.msra.mxu0 %v1151
    %1661 = vmatprep.subr.bf16.mxu0 %v1161
    %1662 = vmatpush1.bf16.msra.mxu0 %v1160
    %1663 = vmatprep.subr.bf16.mxu0 %v1170
    %1664 = vmatpush1.bf16.msra.mxu0 %v1169
    %1665 = vmatprep.subr.bf16.mxu0 %v1179
    %1666 = vmatpush1.bf16.msra.mxu0 %v1178
    %1667 = vmatprep.mubr.bf16.mxu0 %v362
    %1668 = vmatmul.mubr.bf16.gmra.mrb[0].mxu0 %v355
    %v1669 = vpop.f32.mrb[0].mxu0
    %v1670 = vadd.f32 %v314, %v1669
    %v1671 = vpop.f32.mrb[0].mxu0
    %v1672 = vadd.f32 %v318, %v1671
    %v1673 = vpop.f32.mrb[0].mxu0
    %v1674 = vpop.f32.mrb[0].mxu0
    %1675 = vdwg.mxu0
    %1676 = vmatprep.subr.bf16.mxu0 %v1188
    %1677 = vmatpush1.bf16.msra.mxu0 %v1187
    %1678 = vmatprep.subr.bf16.mxu0 %v1197
    %1679 = vmatpush1.bf16.msra.mxu0 %v1196
    %1680 = vmatprep.subr.bf16.mxu0 %v1206
    %1681 = vmatpush1.bf16.msra.mxu0 %v1205
    %1682 = vmatprep.subr.bf16.mxu0 %v1215
    %1683 = vmatpush1.bf16.msra.mxu0 %v1214
    %1684 = vmatprep.subr.bf16.mxu0 %v1224
    %1685 = vmatpush1.bf16.msra.mxu0 %v1223
    %1686 = vmatprep.subr.bf16.mxu0 %v1233
    %1687 = vmatpush1.bf16.msra.mxu0 %v1232
    %1688 = vmatprep.subr.bf16.mxu0 %v1242
    %1689 = vmatpush1.bf16.msra.mxu0 %v1241
    %1690 = vmatprep.subr.bf16.mxu0 %v1251
    %1691 = vmatpush1.bf16.msra.mxu0 %v1250
    %1692 = vmatprep.subr.bf16.mxu0 0
    %1693 = vmatpush1.bf16.msra.mxu0 0
    %1694 = vmatprep.subr.bf16.mxu0 0
    %1695 = vmatpush1.bf16.msra.mxu0 0
    %1696 = vmatprep.subr.bf16.mxu0 0
    %1697 = vmatpush1.bf16.msra.mxu0 0
    %1698 = vmatprep.subr.bf16.mxu0 0
    %1699 = vmatpush1.bf16.msra.mxu0 0
    %1700 = vmatprep.subr.bf16.mxu0 0
    %1701 = vmatpush1.bf16.msra.mxu0 0
    %1702 = vmatprep.subr.bf16.mxu0 0
    %1703 = vmatpush1.bf16.msra.mxu0 0
    %1704 = vmatprep.subr.bf16.mxu0 0
    %1705 = vmatpush1.bf16.msra.mxu0 0
    %1706 = vmatprep.subr.bf16.mxu0 0
    %1707 = vmatpush1.bf16.msra.mxu0 0
    %1708 = vmatprep.mubr.bf16.mxu0 0
    %1709 = vmatmul.mubr.bf16.gmra.mrb[0].mxu0 %v363
    %v1710 = vpop.f32.mrb[0].mxu0
    %v1711 = vadd.f32 %v1670, %v1710
    %v1712 = vpop.f32.mrb[0].mxu0
    %v1713 = vadd.f32 %v1672, %v1712
    %v1714 = vpop.f32.mrb[0].mxu0
    %v1715 = vpop.f32.mrb[0].mxu0
    %1716 = vdwg.mxu0
    %1717 = vmatprep.subr.bf16.mxu0 %v1046
    %1718 = vmatpush1.bf16.msra.mxu0 %v1045
    %1719 = vmatprep.subr.bf16.mxu0 %v1055
    %1720 = vmatpush1.bf16.msra.mxu0 %v1054
    %1721 = vmatprep.subr.bf16.mxu0 %v1064
    %1722 = vmatpush1.bf16.msra.mxu0 %v1063
    %1723 = vmatprep.subr.bf16.mxu0 %v1073
    %1724 = vmatpush1.bf16.msra.mxu0 %v1072
    %1725 = vmatprep.subr.bf16.mxu0 %v1082
    %1726 = vmatpush1.bf16.msra.mxu0 %v1081
    %1727 = vmatprep.subr.bf16.mxu0 %v1091
    %1728 = vmatpush1.bf16.msra.mxu0 %v1090
    %1729 = vmatprep.subr.bf16.mxu0 %v1100
    %1730 = vmatpush1.bf16.msra.mxu0 %v1099
    %1731 = vmatprep.subr.bf16.mxu0 %v1109
    %1732 = vmatpush1.bf16.msra.mxu0 %v1108
    %1733 = vmatprep.subr.bf16.mxu0 %v1118
    %1734 = vmatpush1.bf16.msra.mxu0 %v1117
    %1735 = vmatprep.subr.bf16.mxu0 %v1127
    %1736 = vmatpush1.bf16.msra.mxu0 %v1126
    %1737 = vmatprep.subr.bf16.mxu0 %v1136
    %1738 = vmatpush1.bf16.msra.mxu0 %v1135
    %1739 = vmatprep.subr.bf16.mxu0 %v1145
    %1740 = vmatpush1.bf16.msra.mxu0 %v1144
    %1741 = vmatprep.subr.bf16.mxu0 %v1154
    %1742 = vmatpush1.bf16.msra.mxu0 %v1153
    %1743 = vmatprep.subr.bf16.mxu0 %v1163
    %1744 = vmatpush1.bf16.msra.mxu0 %v1162
    %1745 = vmatprep.subr.bf16.mxu0 %v1172
    %1746 = vmatpush1.bf16.msra.mxu0 %v1171
    %1747 = vmatprep.subr.bf16.mxu0 %v1181
    %1748 = vmatpush1.bf16.msra.mxu0 %v1180
    %1749 = vmatprep.mubr.bf16.mxu0 %v362
    %1750 = vmatmul.mubr.bf16.gmra.mrb[0].mxu0 %v355
    %v1751 = vpop.f32.mrb[0].mxu0
    %v1752 = vadd.f32 %v322, %v1751
    %v1753 = vpop.f32.mrb[0].mxu0
    %v1754 = vadd.f32 %v326, %v1753
    %v1755 = vpop.f32.mrb[0].mxu0
    %v1756 = vpop.f32.mrb[0].mxu0
    %1757 = vdwg.mxu0
    %1758 = vmatprep.subr.bf16.mxu0 %v1190
    %1759 = vmatpush1.bf16.msra.mxu0 %v1189
    %1760 = vmatprep.subr.bf16.mxu0 %v1199
    %1761 = vmatpush1.bf16.msra.mxu0 %v1198
    %1762 = vmatprep.subr.bf16.mxu0 %v1208
    %1763 = vmatpush1.bf16.msra.mxu0 %v1207
    %1764 = vmatprep.subr.bf16.mxu0 %v1217
    %1765 = vmatpush1.bf16.msra.mxu0 %v1216
    %1766 = vmatprep.subr.bf16.mxu0 %v1226
    %1767 = vmatpush1.bf16.msra.mxu0 %v1225
    %1768 = vmatprep.subr.bf16.mxu0 %v1235
    %1769 = vmatpush1.bf16.msra.mxu0 %v1234
    %1770 = vmatprep.subr.bf16.mxu0 %v1244
    %1771 = vmatpush1.bf16.msra.mxu0 %v1243
    %1772 = vmatprep.subr.bf16.mxu0 %v1253
    %1773 = vmatpush1.bf16.msra.mxu0 %v1252
    %1774 = vmatprep.subr.bf16.mxu0 0
    %1775 = vmatpush1.bf16.msra.mxu0 0
    %1776 = vmatprep.subr.bf16.mxu0 0
    %1777 = vmatpush1.bf16.msra.mxu0 0
    %1778 = vmatprep.subr.bf16.mxu0 0
    %1779 = vmatpush1.bf16.msra.mxu0 0
    %1780 = vmatprep.subr.bf16.mxu0 0
    %1781 = vmatpush1.bf16.msra.mxu0 0
    %1782 = vmatprep.subr.bf16.mxu0 0
    %1783 = vmatpush1.bf16.msra.mxu0 0
    %1784 = vmatprep.subr.bf16.mxu0 0
    %1785 = vmatpush1.bf16.msra.mxu0 0
    %1786 = vmatprep.subr.bf16.mxu0 0
    %1787 = vmatpush1.bf16.msra.mxu0 0
    %1788 = vmatprep.subr.bf16.mxu0 0
    %1789 = vmatpush1.bf16.msra.mxu0 0
    %1790 = vmatprep.mubr.bf16.mxu0 0
    %1791 = vmatmul.mubr.bf16.gmra.mrb[0].mxu0 %v363
    %v1792 = vpop.f32.mrb[0].mxu0
    %v1793 = vadd.f32 %v1752, %v1792
    %v1794 = vpop.f32.mrb[0].mxu0
    %v1795 = vadd.f32 %v1754, %v1794
    %v1796 = vpop.f32.mrb[0].mxu0
    %v1797 = vpop.f32.mrb[0].mxu0
    %1798 = vdwg.mxu0
    %1799 = vmatprep.subr.bf16.mxu0 0
    %1800 = vmatpush1.bf16.msra.mxu0 %v1047
    %1801 = vmatprep.subr.bf16.mxu0 0
    %1802 = vmatpush1.bf16.msra.mxu0 %v1056
    %1803 = vmatprep.subr.bf16.mxu0 0
    %1804 = vmatpush1.bf16.msra.mxu0 %v1065
    %1805 = vmatprep.subr.bf16.mxu0 0
    %1806 = vmatpush1.bf16.msra.mxu0 %v1074
    %1807 = vmatprep.subr.bf16.mxu0 0
    %1808 = vmatpush1.bf16.msra.mxu0 %v1083
    %1809 = vmatprep.subr.bf16.mxu0 0
    %1810 = vmatpush1.bf16.msra.mxu0 %v1092
    %1811 = vmatprep.subr.bf16.mxu0 0
    %1812 = vmatpush1.bf16.msra.mxu0 %v1101
    %1813 = vmatprep.subr.bf16.mxu0 0
    %1814 = vmatpush1.bf16.msra.mxu0 %v1110
    %1815 = vmatprep.subr.bf16.mxu0 0
    %1816 = vmatpush1.bf16.msra.mxu0 %v1119
    %1817 = vmatprep.subr.bf16.mxu0 0
    %1818 = vmatpush1.bf16.msra.mxu0 %v1128
    %1819 = vmatprep.subr.bf16.mxu0 0
    %1820 = vmatpush1.bf16.msra.mxu0 %v1137
    %1821 = vmatprep.subr.bf16.mxu0 0
    %1822 = vmatpush1.bf16.msra.mxu0 %v1146
    %1823 = vmatprep.subr.bf16.mxu0 0
    %1824 = vmatpush1.bf16.msra.mxu0 %v1155
    %1825 = vmatprep.subr.bf16.mxu0 0
    %1826 = vmatpush1.bf16.msra.mxu0 %v1164
    %1827 = vmatprep.subr.bf16.mxu0 0
    %1828 = vmatpush1.bf16.msra.mxu0 %v1173
    %1829 = vmatprep.subr.bf16.mxu0 0
    %1830 = vmatpush1.bf16.msra.mxu0 %v1182
    %1831 = vmatprep.mubr.bf16.mxu0 %v362
    %1832 = vmatmul.mubr.bf16.gmra.mrb[0].mxu0 %v355
    %v1833 = vpop.f32.mrb[0].mxu0
    %v1834 = vadd.f32 %v330, %v1833
    %v1835 = vpop.f32.mrb[0].mxu0
    %v1836 = vpop.f32.mrb[0].mxu0
    %v1837 = vpop.f32.mrb[0].mxu0
    %1838 = vdwg.mxu0
    %1839 = vmatprep.subr.bf16.mxu0 0
    %1840 = vmatpush1.bf16.msra.mxu0 %v1191
    %1841 = vmatprep.subr.bf16.mxu0 0
    %1842 = vmatpush1.bf16.msra.mxu0 %v1200
    %1843 = vmatprep.subr.bf16.mxu0 0
    %1844 = vmatpush1.bf16.msra.mxu0 %v1209
    %1845 = vmatprep.subr.bf16.mxu0 0
    %1846 = vmatpush1.bf16.msra.mxu0 %v1218
    %1847 = vmatprep.subr.bf16.mxu0 0
    %1848 = vmatpush1.bf16.msra.mxu0 %v1227
    %1849 = vmatprep.subr.bf16.mxu0 0
    %1850 = vmatpush1.bf16.msra.mxu0 %v1236
    %1851 = vmatprep.subr.bf16.mxu0 0
    %1852 = vmatpush1.bf16.msra.mxu0 %v1245
    %1853 = vmatprep.subr.bf16.mxu0 0
    %1854 = vmatpush1.bf16.msra.mxu0 %v1254
    %1855 = vmatprep.subr.bf16.mxu0 0
    %1856 = vmatpush1.bf16.msra.mxu0 0
    %1857 = vmatprep.subr.bf16.mxu0 0
    %1858 = vmatpush1.bf16.msra.mxu0 0
    %1859 = vmatprep.subr.bf16.mxu0 0
    %1860 = vmatpush1.bf16.msra.mxu0 0
    %1861 = vmatprep.subr.bf16.mxu0 0
    %1862 = vmatpush1.bf16.msra.mxu0 0
    %1863 = vmatprep.subr.bf16.mxu0 0
    %1864 = vmatpush1.bf16.msra.mxu0 0
    %1865 = vmatprep.subr.bf16.mxu0 0
    %1866 = vmatpush1.bf16.msra.mxu0 0
    %1867 = vmatprep.subr.bf16.mxu0 0
    %1868 = vmatpush1.bf16.msra.mxu0 0
    %1869 = vmatprep.subr.bf16.mxu0 0
    %1870 = vmatpush1.bf16.msra.mxu0 0
    %1871 = vmatprep.mubr.bf16.mxu0 0
    %1872 = vmatmul.mubr.bf16.gmra.mrb[0].mxu0 %v363
    %v1873 = vpop.f32.mrb[0].mxu0
    %v1874 = vadd.f32 %v1834, %v1873
    %v1875 = vpop.f32.mrb[0].mxu0
    %v1876 = vpop.f32.mrb[0].mxu0
    %v1877 = vpop.f32.mrb[0].mxu0
    %1878 = vdwg.mxu0
    %v1879 = vmax.f32 %v1547, 0.0
    %v1880 = vmax.f32 %v1549, 0.0
    %v1881 = vmax.f32 %v1629, 0.0
    %v1882 = vmax.f32 %v1631, 0.0
    %v1883 = vmax.f32 %v1711, 0.0
    %v1884 = vmax.f32 %v1713, 0.0
    %v1885 = vmax.f32 %v1793, 0.0
    %v1886 = vmax.f32 %v1795, 0.0
    %v1887 = vmax.f32 %v1874, 0.0
    %v1888 = vpack.c.bf16 %v1879, %v1879
    %v1889 = vpack.c.bf16 %v1880, %v1880
    %v1890 = vpack.c.bf16 %v1881, %v1881
    %v1891 = vpack.c.bf16 %v1882, %v1882
    %v1892 = vpack.c.bf16 %v1883, %v1883
    %v1893 = vpack.c.bf16 %v1884, %v1884
    %v1894 = vpack.c.bf16 %v1885, %v1885
    %v1895 = vpack.c.bf16 %v1886, %v1886
    %v1896 = vpack.c.bf16 %v1887, %v1887
    %v1897 = vld [vmem:[#allocation5] sm:$0xf]
    %v1898 = vld [vmem:[#allocation5 + $0x4] sm:$0xf]
    %v1899 = vld [vmem:[#allocation5 + $0x8] sm:$0xf]
    %v1900 = vld [vmem:[#allocation5 + $0xc] sm:$0xf]
    %v1901 = vld [vmem:[#allocation5 + $0x10] sm:$0xf]
    %v1902 = vld [vmem:[#allocation5 + $0x14] sm:$0xf]
    %v1903 = vld [vmem:[#allocation5 + $0x18] sm:$0xf]
    %v1904 = vld [vmem:[#allocation5 + $0x1c] sm:$0xf]
    %v1905 = vld [vmem:[#allocation5 + $0x20] sm:$0xf]
    %v1906 = vld [vmem:[#allocation5 + $0x24] sm:$0xf]
    %v1907 = vld [vmem:[#allocation5 + $0x28] sm:$0xf]
    %v1908 = vld [vmem:[#allocation5 + $0x2c] sm:$0xf]
    %v1909 = vld [vmem:[#allocation5 + $0x30] sm:$0xf]
    %v1910 = vld [vmem:[#allocation5 + $0x34] sm:$0xf]
    %v1911 = vld [vmem:[#allocation5 + $0x38] sm:$0xf]
    %v1912 = vld [vmem:[#allocation5 + $0x3c] sm:$0xf]
    %v1913 = vld [vmem:[#allocation5 + $0x40] sm:$0xf]
    %v1914 = vld [vmem:[#allocation5 + $0x44] sm:$0xf]
    %v1915 = vld [vmem:[#allocation5 + $0x48] sm:$0xf]
    %v1916 = vld [vmem:[#allocation5 + $0x4c] sm:$0xf]
    %v1917 = vld [vmem:[#allocation5 + $0x50] sm:$0xf]
    %v1918 = vld [vmem:[#allocation5 + $0x54] sm:$0xf]
    %v1919 = vld [vmem:[#allocation5 + $0x58] sm:$0xf]
    %v1920 = vld [vmem:[#allocation5 + $0x5c] sm:$0xf]
    %v1921 = vld [vmem:[#allocation5 + $0x60] sm:$0xf]
    %v1922 = vld [vmem:[#allocation5 + $0x64] sm:$0xf]
    %v1923 = vld [vmem:[#allocation5 + $0x68] sm:$0xf]
    %v1924 = vld [vmem:[#allocation5 + $0x6c] sm:$0xf]
    %v1925 = vld [vmem:[#allocation5 + $0x70] sm:$0xf]
    %v1926 = vld [vmem:[#allocation5 + $0x74] sm:$0xf]
    %v1927 = vld [vmem:[#allocation5 + $0x78] sm:$0xf]
    %v1928 = vld [vmem:[#allocation5 + $0x7c] sm:$0xf]
    %v1929 = vld [vmem:[#allocation5 + $0x80] sm:$0xf]
    %v1930 = vld [vmem:[#allocation5 + $0x84] sm:$0xf]
    %v1931 = vld [vmem:[#allocation5 + $0x88] sm:$0xf]
    %v1932 = vld [vmem:[#allocation5 + $0x8c] sm:$0xf]
    %v1933 = vld [vmem:[#allocation5 + $0x90] sm:$0xf]
    %v1934 = vld [vmem:[#allocation5 + $0x94] sm:$0xf]
    %v1935 = vld [vmem:[#allocation5 + $0x98] sm:$0xf]
    %v1936 = vld [vmem:[#allocation5 + $0x9c] sm:$0xf]
    %v1937 = vld [vmem:[#allocation5 + $0xa0] sm:$0xf]
    %v1938 = vld [vmem:[#allocation5 + $0xa4] sm:$0xf]
    %v1939 = vld [vmem:[#allocation5 + $0xa8] sm:$0xf]
    %v1940 = vld [vmem:[#allocation5 + $0xac] sm:$0xf]
    %v1941 = vld [vmem:[#allocation5 + $0xb0] sm:$0xf]
    %v1942 = vld [vmem:[#allocation5 + $0xb4] sm:$0xf]
    %v1943 = vld [vmem:[#allocation5 + $0xb8] sm:$0xf]
    %v1944 = vld [vmem:[#allocation5 + $0xbc] sm:$0xf]
    %v1945 = vld [vmem:[#allocation5 + $0xc0] sm:$0xf]
    %v1946 = vld [vmem:[#allocation5 + $0xc4] sm:$0xf]
    %v1947 = vld [vmem:[#allocation5 + $0xc8] sm:$0xf]
    %v1948 = vld [vmem:[#allocation5 + $0xcc] sm:$0xf]
    %v1949 = vld [vmem:[#allocation5 + $0xd0] sm:$0xf]
    %v1950 = vld [vmem:[#allocation5 + $0xd4] sm:$0xf]
    %v1951 = vld [vmem:[#allocation5 + $0xd8] sm:$0xf]
    %v1952 = vld [vmem:[#allocation5 + $0xdc] sm:$0xf]
    %v1953 = vld [vmem:[#allocation5 + $0xe0] sm:$0xf]
    %v1954 = vld [vmem:[#allocation5 + $0xe4] sm:$0xf]
    %v1955 = vld [vmem:[#allocation5 + $0xe8] sm:$0xf]
    %v1956 = vld [vmem:[#allocation5 + $0xec] sm:$0xf]
    %v1957 = vld [vmem:[#allocation5 + $0xf0] sm:$0xf]
    %v1958 = vld [vmem:[#allocation5 + $0xf4] sm:$0xf]
    %v1959 = vld [vmem:[#allocation5 + $0xf8] sm:$0xf]
    %v1960 = vld [vmem:[#allocation5 + $0xfc] sm:$0xf]
    %v1961 = vld [vmem:[#allocation5 + $0x100] sm:$0xf]
    %v1962 = vld [vmem:[#allocation5 + $0x104] sm:$0xf]
    %v1963 = vld [vmem:[#allocation5 + $0x108] sm:$0xf]
    %v1964 = vld [vmem:[#allocation5 + $0x10c] sm:$0xf]
    %v1965 = vld [vmem:[#allocation5 + $0x110] sm:$0xf]
    %v1966 = vld [vmem:[#allocation5 + $0x114] sm:$0xf]
    %v1967 = vld [vmem:[#allocation5 + $0x118] sm:$0xf]
    %v1968 = vld [vmem:[#allocation5 + $0x11c] sm:$0xf]
    %v1969 = vld [vmem:[#allocation5 + $0x120] sm:$0xf]
    %v1970 = vld [vmem:[#allocation5 + $0x124] sm:$0xf]
    %v1971 = vld [vmem:[#allocation5 + $0x128] sm:$0xf]
    %v1972 = vld [vmem:[#allocation5 + $0x12c] sm:$0xf]
    %v1973 = vld [vmem:[#allocation5 + $0x130] sm:$0xf]
    %v1974 = vld [vmem:[#allocation5 + $0x134] sm:$0xf]
    %v1975 = vld [vmem:[#allocation5 + $0x138] sm:$0xf]
    %v1976 = vld [vmem:[#allocation5 + $0x13c] sm:$0xf]
    %v1977 = vld [vmem:[#allocation5 + $0x140] sm:$0xf]
    %v1978 = vld [vmem:[#allocation5 + $0x144] sm:$0xf]
    %v1979 = vld [vmem:[#allocation5 + $0x148] sm:$0xf]
    %v1980 = vld [vmem:[#allocation5 + $0x14c] sm:$0xf]
    %v1981 = vld [vmem:[#allocation5 + $0x150] sm:$0xf]
    %v1982 = vld [vmem:[#allocation5 + $0x154] sm:$0xf]
    %v1983 = vld [vmem:[#allocation5 + $0x158] sm:$0xf]
    %v1984 = vld [vmem:[#allocation5 + $0x15c] sm:$0xf]
    %v1985 = vld [vmem:[#allocation5 + $0x160] sm:$0xf]
    %v1986 = vld [vmem:[#allocation5 + $0x164] sm:$0xf]
    %v1987 = vld [vmem:[#allocation5 + $0x168] sm:$0xf]
    %v1988 = vld [vmem:[#allocation5 + $0x16c] sm:$0xf]
    %v1989 = vld [vmem:[#allocation5 + $0x170] sm:$0xf]
    %v1990 = vld [vmem:[#allocation5 + $0x174] sm:$0xf]
    %v1991 = vld [vmem:[#allocation5 + $0x178] sm:$0xf]
    %v1992 = vld [vmem:[#allocation5 + $0x17c] sm:$0xf]
    %v1993 = vld [vmem:[#allocation5 + $0x180] sm:$0xf]
    %v1994 = vld [vmem:[#allocation5 + $0x184] sm:$0xf]
    %v1995 = vld [vmem:[#allocation5 + $0x188] sm:$0xf]
    %v1996 = vld [vmem:[#allocation5 + $0x18c] sm:$0xf]
    %v1997 = vld [vmem:[#allocation5 + $0x190] sm:$0xf]
    %v1998 = vld [vmem:[#allocation5 + $0x194] sm:$0xf]
    %v1999 = vld [vmem:[#allocation5 + $0x198] sm:$0xf]
    %v2000 = vld [vmem:[#allocation5 + $0x19c] sm:$0xf]
    %v2001 = vld [vmem:[#allocation5 + $0x1a0] sm:$0xf]
    %v2002 = vld [vmem:[#allocation5 + $0x1a4] sm:$0xf]
    %v2003 = vld [vmem:[#allocation5 + $0x1a8] sm:$0xf]
    %v2004 = vld [vmem:[#allocation5 + $0x1ac] sm:$0xf]
    %v2005 = vld [vmem:[#allocation5 + $0x1b0] sm:$0xf]
    %v2006 = vld [vmem:[#allocation5 + $0x1b4] sm:$0xf]
    %v2007 = vld [vmem:[#allocation5 + $0x1b8] sm:$0xf]
    %v2008 = vld [vmem:[#allocation5 + $0x1bc] sm:$0xf]
    %v2009 = vld [vmem:[#allocation5 + $0x1c0] sm:$0xf]
    %v2010 = vld [vmem:[#allocation5 + $0x1c4] sm:$0xf]
    %v2011 = vld [vmem:[#allocation5 + $0x1c8] sm:$0xf]
    %v2012 = vld [vmem:[#allocation5 + $0x1cc] sm:$0xf]
    %v2013 = vld [vmem:[#allocation5 + $0x1d0] sm:$0xf]
    %v2014 = vld [vmem:[#allocation5 + $0x1d4] sm:$0xf]
    %v2015 = vld [vmem:[#allocation5 + $0x1d8] sm:$0xf]
    %v2016 = vld [vmem:[#allocation5 + $0x1dc] sm:$0xf]
    %v2017 = vld [vmem:[#allocation5 + $0x1e0] sm:$0xf]
    %v2018 = vld [vmem:[#allocation5 + $0x1e4] sm:$0xf]
    %v2019 = vld [vmem:[#allocation5 + $0x1e8] sm:$0xf]
    %v2020 = vld [vmem:[#allocation5 + $0x1ec] sm:$0xf]
    %v2021 = vld [vmem:[#allocation5 + $0x1f0] sm:$0xf]
    %v2022 = vld [vmem:[#allocation5 + $0x1f4] sm:$0xf]
    %v2023 = vld [vmem:[#allocation5 + $0x1f8] sm:$0xf]
    %v2024 = vld [vmem:[#allocation5 + $0x1fc] sm:$0xf]
    %v2025 = vld [vmem:[#allocation5 + $0x200] sm:$0xf]
    %v2026 = vld [vmem:[#allocation5 + $0x204] sm:$0xf]
    %v2027 = vld [vmem:[#allocation5 + $0x208] sm:$0xf]
    %v2028 = vld [vmem:[#allocation5 + $0x20c] sm:$0xf]
    %v2029 = vld [vmem:[#allocation5 + $0x210] sm:$0xf]
    %v2030 = vld [vmem:[#allocation5 + $0x214] sm:$0xf]
    %v2031 = vld [vmem:[#allocation5 + $0x218] sm:$0xf]
    %v2032 = vld [vmem:[#allocation5 + $0x21c] sm:$0xf]
    %v2033 = vld [vmem:[#allocation5 + $0x220] sm:$0xf]
    %v2034 = vld [vmem:[#allocation5 + $0x224] sm:$0xf]
    %v2035 = vld [vmem:[#allocation5 + $0x228] sm:$0xf]
    %v2036 = vld [vmem:[#allocation5 + $0x22c] sm:$0xf]
    %v2037 = vld [vmem:[#allocation5 + $0x230] sm:$0xf]
    %v2038 = vld [vmem:[#allocation5 + $0x234] sm:$0xf]
    %v2039 = vld [vmem:[#allocation5 + $0x238] sm:$0xf]
    %v2040 = vld [vmem:[#allocation5 + $0x23c] sm:$0xf]
    %v2041 = vld [vmem:[%s4] sm:$0x1]
    %v2043 = vlaneseq
    %v2044 = vshrl.u32 %v2043, 7
    %v2045 = vsub.s32 0, %v2044
    %v2046 = vrot.slane %v2041, %v2045
    %v2192 = vunpack.c.l.b16 %v1897
    %v2193 = vunpack.c.l.b16 %v1898
    %v2194 = vunpack.c.l.b16 %v1899
    %v2195 = vunpack.c.l.b16 %v1900
    %v2196 = vunpack.c.l.b16 %v1901
    %v2197 = vunpack.c.l.b16 %v1902
    %v2198 = vunpack.c.l.b16 %v1903
    %v2199 = vunpack.c.l.b16 %v1904
    %v2200 = vunpack.c.l.b16 %v1905
    %v2201 = vunpack.c.l.b16 %v1906
    %v2202 = vunpack.c.l.b16 %v1907
    %v2203 = vunpack.c.l.b16 %v1908
    %v2204 = vunpack.c.l.b16 %v1909
    %v2205 = vunpack.c.l.b16 %v1910
    %v2206 = vunpack.c.l.b16 %v1911
    %v2207 = vunpack.c.l.b16 %v1912
    %v2208 = vunpack.c.l.b16 %v1913
    %v2209 = vunpack.c.l.b16 %v1914
    %v2210 = vunpack.c.l.b16 %v1915
    %v2211 = vunpack.c.l.b16 %v1916
    %v2212 = vunpack.c.l.b16 %v1917
    %v2213 = vunpack.c.l.b16 %v1918
    %v2214 = vunpack.c.l.b16 %v1919
    %v2215 = vunpack.c.l.b16 %v1920
    %v2216 = vunpack.c.l.b16 %v1921
    %v2217 = vunpack.c.l.b16 %v1922
    %v2218 = vunpack.c.l.b16 %v1923
    %v2219 = vunpack.c.l.b16 %v1924
    %v2220 = vunpack.c.l.b16 %v1925
    %v2221 = vunpack.c.l.b16 %v1926
    %v2222 = vunpack.c.l.b16 %v1927
    %v2223 = vunpack.c.l.b16 %v1928
    %v2224 = vunpack.c.l.b16 %v1929
    %v2225 = vunpack.c.l.b16 %v1930
    %v2226 = vunpack.c.l.b16 %v1931
    %v2227 = vunpack.c.l.b16 %v1932
    %v2228 = vunpack.c.l.b16 %v1933
    %v2229 = vunpack.c.l.b16 %v1934
    %v2230 = vunpack.c.l.b16 %v1935
    %v2231 = vunpack.c.l.b16 %v1936
    %v2232 = vunpack.c.l.b16 %v1937
    %v2233 = vunpack.c.l.b16 %v1938
    %v2234 = vunpack.c.l.b16 %v1939
    %v2235 = vunpack.c.l.b16 %v1940
    %v2236 = vunpack.c.l.b16 %v1941
    %v2237 = vunpack.c.l.b16 %v1942
    %v2238 = vunpack.c.l.b16 %v1943
    %v2239 = vunpack.c.l.b16 %v1944
    %v2240 = vunpack.c.l.b16 %v1945
    %v2241 = vunpack.c.l.b16 %v1946
    %v2242 = vunpack.c.l.b16 %v1947
    %v2243 = vunpack.c.l.b16 %v1948
    %v2244 = vunpack.c.l.b16 %v1949
    %v2245 = vunpack.c.l.b16 %v1950
    %v2246 = vunpack.c.l.b16 %v1951
    %v2247 = vunpack.c.l.b16 %v1952
    %v2248 = vunpack.c.l.b16 %v1953
    %v2249 = vunpack.c.l.b16 %v1954
    %v2250 = vunpack.c.l.b16 %v1955
    %v2251 = vunpack.c.l.b16 %v1956
    %v2252 = vunpack.c.l.b16 %v1957
    %v2253 = vunpack.c.l.b16 %v1958
    %v2254 = vunpack.c.l.b16 %v1959
    %v2255 = vunpack.c.l.b16 %v1960
    %v2256 = vunpack.c.l.b16 %v1961
    %v2257 = vunpack.c.l.b16 %v1962
    %v2258 = vunpack.c.l.b16 %v1963
    %v2259 = vunpack.c.l.b16 %v1964
    %v2260 = vunpack.c.l.b16 %v1965
    %v2261 = vunpack.c.l.b16 %v1966
    %v2262 = vunpack.c.l.b16 %v1967
    %v2263 = vunpack.c.l.b16 %v1968
    %v2264 = vunpack.c.l.b16 %v1969
    %v2265 = vunpack.c.l.b16 %v1970
    %v2266 = vunpack.c.l.b16 %v1971
    %v2267 = vunpack.c.l.b16 %v1972
    %v2268 = vunpack.c.l.b16 %v1973
    %v2269 = vunpack.c.l.b16 %v1974
    %v2270 = vunpack.c.l.b16 %v1975
    %v2271 = vunpack.c.l.b16 %v1976
    %v2272 = vunpack.c.l.b16 %v1977
    %v2273 = vunpack.c.l.b16 %v1978
    %v2274 = vunpack.c.l.b16 %v1979
    %v2275 = vunpack.c.l.b16 %v1980
    %v2276 = vunpack.c.l.b16 %v1981
    %v2277 = vunpack.c.l.b16 %v1982
    %v2278 = vunpack.c.l.b16 %v1983
    %v2279 = vunpack.c.l.b16 %v1984
    %v2280 = vunpack.c.l.b16 %v1985
    %v2281 = vunpack.c.l.b16 %v1986
    %v2282 = vunpack.c.l.b16 %v1987
    %v2283 = vunpack.c.l.b16 %v1988
    %v2284 = vunpack.c.l.b16 %v1989
    %v2285 = vunpack.c.l.b16 %v1990
    %v2286 = vunpack.c.l.b16 %v1991
    %v2287 = vunpack.c.l.b16 %v1992
    %v2288 = vunpack.c.l.b16 %v1993
    %v2289 = vunpack.c.l.b16 %v1994
    %v2290 = vunpack.c.l.b16 %v1995
    %v2291 = vunpack.c.l.b16 %v1996
    %v2292 = vunpack.c.l.b16 %v1997
    %v2293 = vunpack.c.l.b16 %v1998
    %v2294 = vunpack.c.l.b16 %v1999
    %v2295 = vunpack.c.l.b16 %v2000
    %v2296 = vunpack.c.l.b16 %v2001
    %v2297 = vunpack.c.l.b16 %v2002
    %v2298 = vunpack.c.l.b16 %v2003
    %v2299 = vunpack.c.l.b16 %v2004
    %v2300 = vunpack.c.l.b16 %v2005
    %v2301 = vunpack.c.l.b16 %v2006
    %v2302 = vunpack.c.l.b16 %v2007
    %v2303 = vunpack.c.l.b16 %v2008
    %v2304 = vunpack.c.l.b16 %v2009
    %v2305 = vunpack.c.l.b16 %v2010
    %v2306 = vunpack.c.l.b16 %v2011
    %v2307 = vunpack.c.l.b16 %v2012
    %v2308 = vunpack.c.l.b16 %v2013
    %v2309 = vunpack.c.l.b16 %v2014
    %v2310 = vunpack.c.l.b16 %v2015
    %v2311 = vunpack.c.l.b16 %v2016
    %v2312 = vunpack.c.l.b16 %v2017
    %v2313 = vunpack.c.l.b16 %v2018
    %v2314 = vunpack.c.l.b16 %v2019
    %v2315 = vunpack.c.l.b16 %v2020
    %v2316 = vunpack.c.l.b16 %v2021
    %v2317 = vunpack.c.l.b16 %v2022
    %v2318 = vunpack.c.l.b16 %v2023
    %v2319 = vunpack.c.l.b16 %v2024
    %v2320 = vunpack.c.l.b16 %v2025
    %v2321 = vunpack.c.l.b16 %v2026
    %v2322 = vunpack.c.l.b16 %v2027
    %v2323 = vunpack.c.l.b16 %v2028
    %v2324 = vunpack.c.l.b16 %v2029
    %v2325 = vunpack.c.l.b16 %v2030
    %v2326 = vunpack.c.l.b16 %v2031
    %v2327 = vunpack.c.l.b16 %v2032
    %v2328 = vunpack.c.l.b16 %v2033
    %v2329 = vunpack.c.l.b16 %v2034
    %v2330 = vunpack.c.l.b16 %v2035
    %v2331 = vunpack.c.l.b16 %v2036
    %v2332 = vunpack.c.l.b16 %v2037
    %v2333 = vunpack.c.l.b16 %v2038
    %v2334 = vunpack.c.l.b16 %v2039
    %v2335 = vunpack.c.l.b16 %v2040
    %v2336 = vpack.c.b16 %v2193, %v2192
    %v2337 = vpack.c.b16 %v2195, %v2194
    %v2338 = vpack.c.b16 %v2197, %v2196
    %v2339 = vpack.c.b16 %v2199, %v2198
    %v2340 = vpack.c.b16 %v2201, %v2200
    %v2341 = vpack.c.b16 %v2203, %v2202
    %v2342 = vpack.c.b16 %v2205, %v2204
    %v2343 = vpack.c.b16 %v2207, %v2206
    %v2344 = vpack.c.b16 %v2209, %v2208
    %v2345 = vpack.c.b16 %v2211, %v2210
    %v2346 = vpack.c.b16 %v2213, %v2212
    %v2347 = vpack.c.b16 %v2215, %v2214
    %v2348 = vpack.c.b16 %v2217, %v2216
    %v2349 = vpack.c.b16 %v2219, %v2218
    %v2350 = vpack.c.b16 %v2221, %v2220
    %v2351 = vpack.c.b16 %v2223, %v2222
    %v2352 = vpack.c.b16 %v2225, %v2224
    %v2353 = vpack.c.b16 %v2227, %v2226
    %v2354 = vpack.c.b16 %v2229, %v2228
    %v2355 = vpack.c.b16 %v2231, %v2230
    %v2356 = vpack.c.b16 %v2233, %v2232
    %v2357 = vpack.c.b16 %v2235, %v2234
    %v2358 = vpack.c.b16 %v2237, %v2236
    %v2359 = vpack.c.b16 %v2239, %v2238
    %v2360 = vpack.c.b16 %v2241, %v2240
    %v2361 = vpack.c.b16 %v2243, %v2242
    %v2362 = vpack.c.b16 %v2245, %v2244
    %v2363 = vpack.c.b16 %v2247, %v2246
    %v2364 = vpack.c.b16 %v2249, %v2248
    %v2365 = vpack.c.b16 %v2251, %v2250
    %v2366 = vpack.c.b16 %v2253, %v2252
    %v2367 = vpack.c.b16 %v2255, %v2254
    %v2368 = vpack.c.b16 %v2257, %v2256
    %v2369 = vpack.c.b16 %v2259, %v2258
    %v2370 = vpack.c.b16 %v2261, %v2260
    %v2371 = vpack.c.b16 %v2263, %v2262
    %v2372 = vpack.c.b16 %v2265, %v2264
    %v2373 = vpack.c.b16 %v2267, %v2266
    %v2374 = vpack.c.b16 %v2269, %v2268
    %v2375 = vpack.c.b16 %v2271, %v2270
    %v2376 = vpack.c.b16 %v2273, %v2272
    %v2377 = vpack.c.b16 %v2275, %v2274
    %v2378 = vpack.c.b16 %v2277, %v2276
    %v2379 = vpack.c.b16 %v2279, %v2278
    %v2380 = vpack.c.b16 %v2281, %v2280
    %v2381 = vpack.c.b16 %v2283, %v2282
    %v2382 = vpack.c.b16 %v2285, %v2284
    %v2383 = vpack.c.b16 %v2287, %v2286
    %v2384 = vpack.c.b16 %v2289, %v2288
    %v2385 = vpack.c.b16 %v2291, %v2290
    %v2386 = vpack.c.b16 %v2293, %v2292
    %v2387 = vpack.c.b16 %v2295, %v2294
    %v2388 = vpack.c.b16 %v2297, %v2296
    %v2389 = vpack.c.b16 %v2299, %v2298
    %v2390 = vpack.c.b16 %v2301, %v2300
    %v2391 = vpack.c.b16 %v2303, %v2302
    %v2392 = vpack.c.b16 %v2305, %v2304
    %v2393 = vpack.c.b16 %v2307, %v2306
    %v2394 = vpack.c.b16 %v2309, %v2308
    %v2395 = vpack.c.b16 %v2311, %v2310
    %v2396 = vpack.c.b16 %v2313, %v2312
    %v2397 = vpack.c.b16 %v2315, %v2314
    %v2398 = vpack.c.b16 %v2317, %v2316
    %v2399 = vpack.c.b16 %v2319, %v2318
    %v2400 = vpack.c.b16 %v2321, %v2320
    %v2401 = vpack.c.b16 %v2323, %v2322
    %v2402 = vpack.c.b16 %v2325, %v2324
    %v2403 = vpack.c.b16 %v2327, %v2326
    %v2404 = vpack.c.b16 %v2329, %v2328
    %v2405 = vpack.c.b16 %v2331, %v2330
    %v2406 = vpack.c.b16 %v2333, %v2332
    %v2407 = vpack.c.b16 %v2335, %v2334
    %2480 = vmatprep.subr.bf16.mxu0 0
    %2481 = vmatpush1.bf16.msra.mxu0 %v2336
    %2482 = vmatprep.subr.bf16.mxu0 0
    %2483 = vmatpush1.bf16.msra.mxu0 %v2337
    %2484 = vmatprep.subr.bf16.mxu0 0
    %2485 = vmatpush1.bf16.msra.mxu0 %v2338
    %2486 = vmatprep.subr.bf16.mxu0 0
    %2487 = vmatpush1.bf16.msra.mxu0 %v2339
    %2488 = vmatprep.subr.bf16.mxu0 0
    %2489 = vmatpush1.bf16.msra.mxu0 %v2340
    %2490 = vmatprep.subr.bf16.mxu0 0
    %2491 = vmatpush1.bf16.msra.mxu0 %v2341
    %2492 = vmatprep.subr.bf16.mxu0 0
    %2493 = vmatpush1.bf16.msra.mxu0 %v2342
    %2494 = vmatprep.subr.bf16.mxu0 0
    %2495 = vmatpush1.bf16.msra.mxu0 %v2343
    %2496 = vmatprep.subr.bf16.mxu0 0
    %2497 = vmatpush1.bf16.msra.mxu0 %v2344
    %2498 = vmatprep.subr.bf16.mxu0 0
    %2499 = vmatpush1.bf16.msra.mxu0 %v2345
    %2500 = vmatprep.subr.bf16.mxu0 0
    %2501 = vmatpush1.bf16.msra.mxu0 %v2346
    %2502 = vmatprep.subr.bf16.mxu0 0
    %2503 = vmatpush1.bf16.msra.mxu0 %v2347
    %2504 = vmatprep.subr.bf16.mxu0 0
    %2505 = vmatpush1.bf16.msra.mxu0 %v2348
    %2506 = vmatprep.subr.bf16.mxu0 0
    %2507 = vmatpush1.bf16.msra.mxu0 %v2349
    %2508 = vmatprep.subr.bf16.mxu0 0
    %2509 = vmatpush1.bf16.msra.mxu0 %v2350
    %2510 = vmatprep.subr.bf16.mxu0 0
    %2511 = vmatpush1.bf16.msra.mxu0 %v2351
    %2512 = vmatprep.mubr.bf16.mxu0 %v1889
    %2513 = vmatmul.mubr.bf16.gmra.mrb[0].mxu0 %v1888
    %v2514 = vpop.f32.mrb[0].mxu0
    %v2515 = vadd.f32 %v2046, %v2514
    %v2516 = vpop.f32.mrb[0].mxu0
    %v2517 = vpop.f32.mrb[0].mxu0
    %v2518 = vpop.f32.mrb[0].mxu0
    %2519 = vdwg.mxu0
    %2520 = vmatprep.subr.bf16.mxu0 0
    %2521 = vmatpush1.bf16.msra.mxu0 %v2352
    %2522 = vmatprep.subr.bf16.mxu0 0
    %2523 = vmatpush1.bf16.msra.mxu0 %v2353
    %2524 = vmatprep.subr.bf16.mxu0 0
    %2525 = vmatpush1.bf16.msra.mxu0 %v2354
    %2526 = vmatprep.subr.bf16.mxu0 0
    %2527 = vmatpush1.bf16.msra.mxu0 %v2355
    %2528 = vmatprep.subr.bf16.mxu0 0
    %2529 = vmatpush1.bf16.msra.mxu0 %v2356
    %2530 = vmatprep.subr.bf16.mxu0 0
    %2531 = vmatpush1.bf16.msra.mxu0 %v2357
    %2532 = vmatprep.subr.bf16.mxu0 0
    %2533 = vmatpush1.bf16.msra.mxu0 %v2358
    %2534 = vmatprep.subr.bf16.mxu0 0
    %2535 = vmatpush1.bf16.msra.mxu0 %v2359
    %2536 = vmatprep.subr.bf16.mxu0 0
    %2537 = vmatpush1.bf16.msra.mxu0 %v2360
    %2538 = vmatprep.subr.bf16.mxu0 0
    %2539 = vmatpush1.bf16.msra.mxu0 %v2361
    %2540 = vmatprep.subr.bf16.mxu0 0
    %2541 = vmatpush1.bf16.msra.mxu0 %v2362
    %2542 = vmatprep.subr.bf16.mxu0 0
    %2543 = vmatpush1.bf16.msra.mxu0 %v2363
    %2544 = vmatprep.subr.bf16.mxu0 0
    %2545 = vmatpush1.bf16.msra.mxu0 %v2364
    %2546 = vmatprep.subr.bf16.mxu0 0
    %2547 = vmatpush1.bf16.msra.mxu0 %v2365
    %2548 = vmatprep.subr.bf16.mxu0 0
    %2549 = vmatpush1.bf16.msra.mxu0 %v2366
    %2550 = vmatprep.subr.bf16.mxu0 0
    %2551 = vmatpush1.bf16.msra.mxu0 %v2367
    %2552 = vmatprep.mubr.bf16.mxu0 %v1891
    %2553 = vmatmul.mubr.bf16.gmra.mrb[0].mxu0 %v1890
    %v2554 = vpop.f32.mrb[0].mxu0
    %v2555 = vadd.f32 %v2515, %v2554
    %v2556 = vpop.f32.mrb[0].mxu0
    %v2557 = vpop.f32.mrb[0].mxu0
    %v2558 = vpop.f32.mrb[0].mxu0
    %2559 = vdwg.mxu0
    %2560 = vmatprep.subr.bf16.mxu0 0
    %2561 = vmatpush1.bf16.msra.mxu0 %v2368
    %2562 = vmatprep.subr.bf16.mxu0 0
    %2563 = vmatpush1.bf16.msra.mxu0 %v2369
    %2564 = vmatprep.subr.bf16.mxu0 0
    %2565 = vmatpush1.bf16.msra.mxu0 %v2370
    %2566 = vmatprep.subr.bf16.mxu0 0
    %2567 = vmatpush1.bf16.msra.mxu0 %v2371
    %2568 = vmatprep.subr.bf16.mxu0 0
    %2569 = vmatpush1.bf16.msra.mxu0 %v2372
    %2570 = vmatprep.subr.bf16.mxu0 0
    %2571 = vmatpush1.bf16.msra.mxu0 %v2373
    %2572 = vmatprep.subr.bf16.mxu0 0
    %2573 = vmatpush1.bf16.msra.mxu0 %v2374
    %2574 = vmatprep.subr.bf16.mxu0 0
    %2575 = vmatpush1.bf16.msra.mxu0 %v2375
    %2576 = vmatprep.subr.bf16.mxu0 0
    %2577 = vmatpush1.bf16.msra.mxu0 %v2376
    %2578 = vmatprep.subr.bf16.mxu0 0
    %2579 = vmatpush1.bf16.msra.mxu0 %v2377
    %2580 = vmatprep.subr.bf16.mxu0 0
    %2581 = vmatpush1.bf16.msra.mxu0 %v2378
    %2582 = vmatprep.subr.bf16.mxu0 0
    %2583 = vmatpush1.bf16.msra.mxu0 %v2379
    %2584 = vmatprep.subr.bf16.mxu0 0
    %2585 = vmatpush1.bf16.msra.mxu0 %v2380
    %2586 = vmatprep.subr.bf16.mxu0 0
    %2587 = vmatpush1.bf16.msra.mxu0 %v2381
    %2588 = vmatprep.subr.bf16.mxu0 0
    %2589 = vmatpush1.bf16.msra.mxu0 %v2382
    %2590 = vmatprep.subr.bf16.mxu0 0
    %2591 = vmatpush1.bf16.msra.mxu0 %v2383
    %2592 = vmatprep.mubr.bf16.mxu0 %v1893
    %2593 = vmatmul.mubr.bf16.gmra.mrb[0].mxu0 %v1892
    %v2594 = vpop.f32.mrb[0].mxu0
    %v2595 = vadd.f32 %v2555, %v2594
    %v2596 = vpop.f32.mrb[0].mxu0
    %v2597 = vpop.f32.mrb[0].mxu0
    %v2598 = vpop.f32.mrb[0].mxu0
    %2599 = vdwg.mxu0
    %2600 = vmatprep.subr.bf16.mxu0 0
    %2601 = vmatpush1.bf16.msra.mxu0 %v2384
    %2602 = vmatprep.subr.bf16.mxu0 0
    %2603 = vmatpush1.bf16.msra.mxu0 %v2385
    %2604 = vmatprep.subr.bf16.mxu0 0
    %2605 = vmatpush1.bf16.msra.mxu0 %v2386
    %2606 = vmatprep.subr.bf16.mxu0 0
    %2607 = vmatpush1.bf16.msra.mxu0 %v2387
    %2608 = vmatprep.subr.bf16.mxu0 0
    %2609 = vmatpush1.bf16.msra.mxu0 %v2388
    %2610 = vmatprep.subr.bf16.mxu0 0
    %2611 = vmatpush1.bf16.msra.mxu0 %v2389
    %2612 = vmatprep.subr.bf16.mxu0 0
    %2613 = vmatpush1.bf16.msra.mxu0 %v2390
    %2614 = vmatprep.subr.bf16.mxu0 0
    %2615 = vmatpush1.bf16.msra.mxu0 %v2391
    %2616 = vmatprep.subr.bf16.mxu0 0
    %2617 = vmatpush1.bf16.msra.mxu0 %v2392
    %2618 = vmatprep.subr.bf16.mxu0 0
    %2619 = vmatpush1.bf16.msra.mxu0 %v2393
    %2620 = vmatprep.subr.bf16.mxu0 0
    %2621 = vmatpush1.bf16.msra.mxu0 %v2394
    %2622 = vmatprep.subr.bf16.mxu0 0
    %2623 = vmatpush1.bf16.msra.mxu0 %v2395
    %2624 = vmatprep.subr.bf16.mxu0 0
    %2625 = vmatpush1.bf16.msra.mxu0 %v2396
    %2626 = vmatprep.subr.bf16.mxu0 0
    %2627 = vmatpush1.bf16.msra.mxu0 %v2397
    %2628 = vmatprep.subr.bf16.mxu0 0
    %2629 = vmatpush1.bf16.msra.mxu0 %v2398
    %2630 = vmatprep.subr.bf16.mxu0 0
    %2631 = vmatpush1.bf16.msra.mxu0 %v2399
    %2632 = vmatprep.mubr.bf16.mxu0 %v1895
    %2633 = vmatmul.mubr.bf16.gmra.mrb[0].mxu0 %v1894
    %v2634 = vpop.f32.mrb[0].mxu0
    %v2635 = vadd.f32 %v2595, %v2634
    %v2636 = vpop.f32.mrb[0].mxu0
    %v2637 = vpop.f32.mrb[0].mxu0
    %v2638 = vpop.f32.mrb[0].mxu0
    %2639 = vdwg.mxu0
    %2640 = vmatprep.subr.bf16.mxu0 0
    %2641 = vmatpush1.bf16.msra.mxu0 %v2400
    %2642 = vmatprep.subr.bf16.mxu0 0
    %2643 = vmatpush1.bf16.msra.mxu0 %v2401
    %2644 = vmatprep.subr.bf16.mxu0 0
    %2645 = vmatpush1.bf16.msra.mxu0 %v2402
    %2646 = vmatprep.subr.bf16.mxu0 0
    %2647 = vmatpush1.bf16.msra.mxu0 %v2403
    %2648 = vmatprep.subr.bf16.mxu0 0
    %2649 = vmatpush1.bf16.msra.mxu0 %v2404
    %2650 = vmatprep.subr.bf16.mxu0 0
    %2651 = vmatpush1.bf16.msra.mxu0 %v2405
    %2652 = vmatprep.subr.bf16.mxu0 0
    %2653 = vmatpush1.bf16.msra.mxu0 %v2406
    %2654 = vmatprep.subr.bf16.mxu0 0
    %2655 = vmatpush1.bf16.msra.mxu0 %v2407
    %2656 = vmatprep.subr.bf16.mxu0 0
    %2657 = vmatpush1.bf16.msra.mxu0 0
    %2658 = vmatprep.subr.bf16.mxu0 0
    %2659 = vmatpush1.bf16.msra.mxu0 0
    %2660 = vmatprep.subr.bf16.mxu0 0
    %2661 = vmatpush1.bf16.msra.mxu0 0
    %2662 = vmatprep.subr.bf16.mxu0 0
    %2663 = vmatpush1.bf16.msra.mxu0 0
    %2664 = vmatprep.subr.bf16.mxu0 0
    %2665 = vmatpush1.bf16.msra.mxu0 0
    %2666 = vmatprep.subr.bf16.mxu0 0
    %2667 = vmatpush1.bf16.msra.mxu0 0
    %2668 = vmatprep.subr.bf16.mxu0 0
    %2669 = vmatpush1.bf16.msra.mxu0 0
    %2670 = vmatprep.subr.bf16.mxu0 0
    %2671 = vmatpush1.bf16.msra.mxu0 0
    %2672 = vmatprep.mubr.bf16.mxu0 0
    %2673 = vmatmul.mubr.bf16.gmra.mrb[0].mxu0 %v1896
    %v2674 = vpop.f32.mrb[0].mxu0
    %v2675 = vadd.f32 %v2635, %v2674
    %v2676 = vpop.f32.mrb[0].mxu0
    %v2677 = vpop.f32.mrb[0].mxu0
    %v2678 = vpop.f32.mrb[0].mxu0
    %2679 = vdwg.mxu0
    %2680 = vst [vmem:[#allocation7] sm:$0x3] %v2675
    // Predicated region
    $region30: #{flex_cnn_forward.1} parent=1 // pred_check
      _
    $region31: #{flex_cnn_forward.1} parent=1 // pred_check_branch
      %2682 = sbr.rel (0) target = $region33
    $region32: #{flex_cnn_forward.1} parent=1 // pred_region
      %s2684 = ssub.s32 32, 32
      %2685 = vsyncadd [#allocation4], %s2684
      %s2687 = sshll.u32 [#allocation7], 4
      %s2688 = int_to_ptr.vmem [resolvable:$true] %s2687
      %2690 = dma.vmem_to_hbm [thread:$0]  %s2688, 32, %s5, [#allocation4]
    $region33: #{flex_cnn_forward.1} parent=1 // pred_fallthru
      _
    // Predicated region
    $region34: #{flex_cnn_forward.1} parent=1 // pred_check
      _
    $region35: #{flex_cnn_forward.1} parent=1 // pred_check_branch
      %2692 = sbr.rel (0) target = $region37
    $region36: #{flex_cnn_forward.1} parent=1 // pred_region
      %2693 = dma.done [#allocation4], 32
    $region37: #{flex_cnn_forward.1} parent=1 // pred_fallthru
      _
    %2694 = vsyncpa [#allocation3], 1
    %2695 = vsyncpa [#allocation6], 1
    %2696 = vsyncpa [#allocation4], 1

</llo_original>
